<compile_context>
chip_gen: v6e
topology: v6e:2x2x1
jax: 0.10.0
libtpu: 0.0.40
codegen_flags: <defaults>
</compile_context>

<pallas_src>
import functools

import numpy as np
import jax
import jax.numpy as jnp
from jax import lax
from jax.experimental import pallas as pl
from jax.experimental.pallas import tpu as pltpu


def _round8(n: int) -> int:
    """Round up to a multiple of 8 (sublane alignment for slab sections)."""
    return (n + 7) & ~7


def _slab_offsets(E: int, H: int):
    """Row offsets of each parameter section inside the packed constant slab."""
    o_wih = 0
    o_whh = o_wih + _round8(E)
    o_bias = o_whh + _round8(H)
    o_w1 = o_bias + 8
    o_b1 = o_w1 + _round8(H)
    o_w2 = o_b1 + 8
    o_b2 = o_w2 + 8
    rows = o_b2 + 8
    return o_wih, o_whh, o_bias, o_w1, o_b1, o_w2, o_b2, rows


def lstm_sentiment_kernel(xemb_ref,   # (T, E)      embedded, flattened sequence
                          slab_ref,   # (rows, 128) packed constants (see layout)
                          out_ref,    # (1, 1)      output
                          *, hidden_size: int):
    H = hidden_size
    G = 4 * H                                   # = 128 lanes (asserted in wrapper)
    T, E = xemb_ref.shape
    o_wih, o_whh, o_bias, o_w1, o_b1, o_w2, o_b2, _ = _slab_offsets(E, H)

    # --- one-time unpack of the constant slab (static, sublane-aligned loads) ---
    wih_t = slab_ref[o_wih:o_wih + E, :]        # (E, 4H)  W_ih^T
    whh_t = slab_ref[o_whh:o_whh + H, :]        # (H, 4H)  W_hh^T, stays resident
    bias = slab_ref[o_bias:o_bias + 1, :]       # (1, 4H)  b_ih + b_hh
    w1_t = slab_ref[o_w1:o_w1 + H, :]           # (H, 128) ln1 weight^T
    b1 = slab_ref[o_b1:o_b1 + 1, :]             # (1, 128) ln1 bias
    w2 = slab_ref[o_w2:o_w2 + 1, :]             # (1, 128) ln2 weight
    b2row = slab_ref[o_b2:o_b2 + 1, :]          # (1, 128) ln2 bias, lane-broadcast

    # --- input projection for all timesteps in one MXU pass, bias fused ---
    #   xg[t] = x_t @ W_ih^T + (b_ih + b_hh)
    xg = jnp.dot(xemb_ref[...], wih_t, preferred_element_type=jnp.float32) + bias

    # --- loop-invariant lane masks for the fused gate activation ---
    # sigmoid(x) = 0.5*tanh(x/2) + 0.5, so ONE tanh over the full (1, 4H) vreg
    # gives sigmoid on the i/f/o bands and tanh on the g band.
    lane = lax.broadcasted_iota(jnp.int32, (1, G), 1)
    is_g = (lane >= 2 * H) & (lane < 3 * H)
    scale = jnp.where(is_g, 1.0, 0.5).astype(jnp.float32)   # pre-scale == post-mul
    shift = jnp.where(is_g, 0.0, 0.5).astype(jnp.float32)   # post-add

    # Per-step rows of the input projection depend only on xg (not on h/c):
    # slice them with static indices outside the recurrence so the extraction
    # is hoisted off the serial dependency chain.
    xg_rows = [xg[t:t + 1, :] for t in range(T)]

    # --- fully-unrolled serial LSTM recurrence (T is small and static) ---
    h = jnp.zeros((1, H), jnp.float32)
    c = jnp.zeros((1, H), jnp.float32)
    for t in range(T):
        g = xg_rows[t] + jnp.dot(h, whh_t, preferred_element_type=jnp.float32)
        act = jnp.tanh(g * scale) * scale + shift            # 1st EUP issue / step
        i_g = act[:, 0 * H:1 * H]
        f_g = act[:, 1 * H:2 * H]
        g_g = act[:, 2 * H:3 * H]
        o_g = act[:, 3 * H:4 * H]
        c = f_g * c + i_g * g_g
        h = o_g * jnp.tanh(c)                                 # 2nd EUP issue / step

    # --- heads: out = sigmoid(ln2(sigmoid(ln1(h_T)))) ---
    z1 = jax.nn.sigmoid(
        jnp.dot(h, w1_t, preferred_element_type=jnp.float32) + b1)   # (1, 128)
    # b2 was broadcast across all 128 lanes on the host; a max-reduce recovers
    # it exactly without any single-lane extraction.
    b2 = jnp.max(b2row, axis=-1, keepdims=True)
    out_ref[...] = jax.nn.sigmoid(jnp.sum(z1 * w2, axis=-1, keepdims=True) + b2)


def lstm_sentiment_forward(x_ids, params):
    """x_ids: (B, S) int32 token ids.  Returns (1, 1) float32."""
    emb, wih, whh, bih, bhh, w1, b1, w2, b2 = params
    H = whh.shape[1]
    E = emb.shape[1]
    assert 4 * H == 128 and w1.shape[0] == 128, "slab packing assumes 4H == 128 lanes"

    # Glue: embedding gather + the module's `view(1, -1, E)` flatten.
    x_emb = jnp.take(emb, x_ids.reshape(-1), axis=0).astype(jnp.float32)   # (T, E)

    # Host-side prep (folded into the XLA producers, free at kernel time):
    # pre-transposed weights, fused bias, and ONE lane-dense constant slab
    # with every section starting on an 8-row boundary.
    o_wih, o_whh, o_bias, o_w1, o_b1, o_w2, o_b2, rows = _slab_offsets(E, H)
    slab = jnp.zeros((rows, 128), jnp.float32)
    slab = slab.at[o_wih:o_wih + E, :].set(wih.T.astype(jnp.float32))
    slab = slab.at[o_whh:o_whh + H, :].set(whh.T.astype(jnp.float32))
    slab = slab.at[o_bias:o_bias + 1, :].set((bih + bhh).astype(jnp.float32))
    slab = slab.at[o_w1:o_w1 + H, :].set(w1.T.astype(jnp.float32))
    slab = slab.at[o_b1:o_b1 + 1, :].set(b1.astype(jnp.float32))
    slab = slab.at[o_w2:o_w2 + 1, :].set(w2.astype(jnp.float32))
    slab = slab.at[o_b2:o_b2 + 1, :].set(jnp.full((1, 128), b2[0, 0], jnp.float32))

    vmem = pl.BlockSpec(memory_space=pltpu.MemorySpace.VMEM)
    return pl.pallas_call(
        functools.partial(lstm_sentiment_kernel, hidden_size=H),
        out_shape=jax.ShapeDtypeStruct((1, 1), jnp.float32),
        in_specs=[vmem, vmem],
        out_specs=vmem,
    )(x_emb, slab)


def lstm_sentiment_ref(x_ids, params):
    """Pure-JAX reference (mirrors PyTorch LSTM semantics, gate order i,f,g,o)."""
    emb, wih, whh, bih, bhh, w1, b1, w2, b2 = params
    H = whh.shape[1]
    x_emb = jnp.take(emb, x_ids.reshape(-1), axis=0).astype(jnp.float32)

    def step(carry, xt):
        h, c = carry
        g = xt @ wih.T + bih[0] + h @ whh.T + bhh[0]
        i = jax.nn.sigmoid(g[0 * H:1 * H])
        f = jax.nn.sigmoid(g[1 * H:2 * H])
        gg = jnp.tanh(g[2 * H:3 * H])
        o = jax.nn.sigmoid(g[3 * H:4 * H])
        c = f * c + i * gg
        h = o * jnp.tanh(c)
        return (h, c), None

    (h, _), _ = lax.scan(step, (jnp.zeros((H,)), jnp.zeros((H,))), x_emb)
    z1 = jax.nn.sigmoid(h @ w1.T + b1[0])
    z2 = jax.nn.sigmoid(z1 @ w2.T + b2[0])
    return z2.reshape(1, 1)


def make_params(key, words_length, embedding_size, hidden_size):
    H, E = hidden_size, embedding_size
    ks = jax.random.split(key, 9)
    s = 1.0 / np.sqrt(H)
    emb = jax.random.normal(ks[0], (words_length, E), jnp.float32)
    wih = jax.random.uniform(ks[1], (4 * H, E), jnp.float32, -s, s)
    whh = jax.random.uniform(ks[2], (4 * H, H), jnp.float32, -s, s)
    bih = jax.random.uniform(ks[3], (1, 4 * H), jnp.float32, -s, s)
    bhh = jax.random.uniform(ks[4], (1, 4 * H), jnp.float32, -s, s)
    w1 = jax.random.uniform(ks[5], (128, H), jnp.float32, -s, s)
    b1 = jax.random.uniform(ks[6], (1, 128), jnp.float32, -s, s)
    w2 = jax.random.uniform(ks[7], (1, 128), jnp.float32, -s, s)
    b2 = jax.random.uniform(ks[8], (1, 1), jnp.float32, -s, s)
    return (emb, wih, whh, bih, bhh, w1, b1, w2, b2)


if __name__ == "__main__":
    words_length = 100
    embedding_size = 16
    hidden_size = 32
    batch, seq = 2, 8  # LSTM sees one flattened sequence of length T = 16

    key = jax.random.PRNGKey(0)
    k_ids, k_par = jax.random.split(key)
    x_ids = jax.random.randint(k_ids, (batch, seq), 0, words_length, dtype=jnp.int32)
    params = make_params(k_par, words_length, embedding_size, hidden_size)

    out = lstm_sentiment_forward(x_ids, params)
    out = jax.block_until_ready(out)

    ref = lstm_sentiment_ref(x_ids, params)
    assert out.shape == (1, 1)
    np.testing.assert_allclose(np.asarray(out), np.asarray(ref), rtol=1e-5, atol=1e-5)

    print("KERNEL_OK")
</pallas_src>

<mosaic_0001>
module attributes {stable_mosaic.version = 11 : i64} {
  func.func @lstm_sentiment_kernel(%arg0: memref<16x16xf32, #tpu.memory_space<vmem>>, %arg1: memref<112x128xf32, #tpu.memory_space<vmem>>, %arg2: memref<1x1xf32, #tpu.memory_space<vmem>>) attributes {dimension_semantics = [], scalar_prefetch = 0 : i64, scratch_operands = 0 : i64, tpu.core_type = #tpu.core_type<tc>} {
    %c0 = arith.constant 0 : index
    %c0_0 = arith.constant 0 : index
    %0 = vector.load %arg1[%c0, %c0_0] : memref<112x128xf32, #tpu.memory_space<vmem>>, vector<16x128xf32>
    %c16 = arith.constant 16 : index
    %c0_1 = arith.constant 0 : index
    %1 = vector.load %arg1[%c16, %c0_1] : memref<112x128xf32, #tpu.memory_space<vmem>>, vector<32x128xf32>
    %c48 = arith.constant 48 : index
    %c0_2 = arith.constant 0 : index
    %2 = vector.load %arg1[%c48, %c0_2] : memref<112x128xf32, #tpu.memory_space<vmem>>, vector<1x128xf32>
    %c56 = arith.constant 56 : index
    %c0_3 = arith.constant 0 : index
    %3 = vector.load %arg1[%c56, %c0_3] : memref<112x128xf32, #tpu.memory_space<vmem>>, vector<32x128xf32>
    %c88 = arith.constant 88 : index
    %c0_4 = arith.constant 0 : index
    %4 = vector.load %arg1[%c88, %c0_4] : memref<112x128xf32, #tpu.memory_space<vmem>>, vector<1x128xf32>
    %c96 = arith.constant 96 : index
    %c0_5 = arith.constant 0 : index
    %5 = vector.load %arg1[%c96, %c0_5] : memref<112x128xf32, #tpu.memory_space<vmem>>, vector<1x128xf32>
    %c104 = arith.constant 104 : index
    %c0_6 = arith.constant 0 : index
    %6 = vector.load %arg1[%c104, %c0_6] : memref<112x128xf32, #tpu.memory_space<vmem>>, vector<1x128xf32>
    %c0_7 = arith.constant 0 : index
    %c0_8 = arith.constant 0 : index
    %7 = vector.load %arg0[%c0_7, %c0_8] : memref<16x16xf32, #tpu.memory_space<vmem>>, vector<16x16xf32>
    %cst = arith.constant dense<0.000000e+00> : vector<16x128xf32>
    %8 = tpu.matmul %7, %0, %cst {dimension_numbers = #tpu.dot_dimension_numbers<[1], [0], [0], [1], [0, 0, 1, 1], [], []>} : vector<16x16xf32>, vector<16x128xf32>, vector<16x128xf32> -> vector<16x128xf32>
    %9 = vector.broadcast %2 : vector<1x128xf32> to vector<16x128xf32>
    %10 = arith.addf %8, %9 : vector<16x128xf32>
    %11 = tpu.iota {dimensions = array<i32: 1>} : vector<1x128xi32>
    %c64_i32 = arith.constant 64 : i32
    %12 = vector.broadcast %c64_i32 : i32 to vector<1x128xi32>
    %13 = arith.cmpi sge, %11, %12 : vector<1x128xi32>
    %c96_i32 = arith.constant 96 : i32
    %14 = vector.broadcast %c96_i32 : i32 to vector<1x128xi32>
    %15 = arith.cmpi slt, %11, %14 : vector<1x128xi32>
    %16 = arith.andi %13, %15 : vector<1x128xi1>
    %cst_9 = arith.constant 1.000000e+00 : f32
    %cst_10 = arith.constant 5.000000e-01 : f32
    %17 = vector.broadcast %cst_9 : f32 to vector<1x128xf32>
    %18 = vector.broadcast %cst_10 : f32 to vector<1x128xf32>
    %19 = arith.select %16, %17, %18 : vector<1x128xi1>, vector<1x128xf32>
    %cst_11 = arith.constant 0.000000e+00 : f32
    %cst_12 = arith.constant 5.000000e-01 : f32
    %20 = vector.broadcast %cst_11 : f32 to vector<1x128xf32>
    %21 = vector.broadcast %cst_12 : f32 to vector<1x128xf32>
    %22 = arith.select %16, %20, %21 : vector<1x128xi1>, vector<1x128xf32>
    %23 = vector.extract_strided_slice %10 {offsets = [0, 0], sizes = [1, 128], strides = [1, 1]} : vector<16x128xf32> to vector<1x128xf32>
    %24 = vector.extract_strided_slice %10 {offsets = [1, 0], sizes = [1, 128], strides = [1, 1]} : vector<16x128xf32> to vector<1x128xf32>
    %25 = vector.extract_strided_slice %10 {offsets = [2, 0], sizes = [1, 128], strides = [1, 1]} : vector<16x128xf32> to vector<1x128xf32>
    %26 = vector.extract_strided_slice %10 {offsets = [3, 0], sizes = [1, 128], strides = [1, 1]} : vector<16x128xf32> to vector<1x128xf32>
    %27 = vector.extract_strided_slice %10 {offsets = [4, 0], sizes = [1, 128], strides = [1, 1]} : vector<16x128xf32> to vector<1x128xf32>
    %28 = vector.extract_strided_slice %10 {offsets = [5, 0], sizes = [1, 128], strides = [1, 1]} : vector<16x128xf32> to vector<1x128xf32>
    %29 = vector.extract_strided_slice %10 {offsets = [6, 0], sizes = [1, 128], strides = [1, 1]} : vector<16x128xf32> to vector<1x128xf32>
    %30 = vector.extract_strided_slice %10 {offsets = [7, 0], sizes = [1, 128], strides = [1, 1]} : vector<16x128xf32> to vector<1x128xf32>
    %31 = vector.extract_strided_slice %10 {offsets = [8, 0], sizes = [1, 128], strides = [1, 1]} : vector<16x128xf32> to vector<1x128xf32>
    %32 = vector.extract_strided_slice %10 {offsets = [9, 0], sizes = [1, 128], strides = [1, 1]} : vector<16x128xf32> to vector<1x128xf32>
    %33 = vector.extract_strided_slice %10 {offsets = [10, 0], sizes = [1, 128], strides = [1, 1]} : vector<16x128xf32> to vector<1x128xf32>
    %34 = vector.extract_strided_slice %10 {offsets = [11, 0], sizes = [1, 128], strides = [1, 1]} : vector<16x128xf32> to vector<1x128xf32>
    %35 = vector.extract_strided_slice %10 {offsets = [12, 0], sizes = [1, 128], strides = [1, 1]} : vector<16x128xf32> to vector<1x128xf32>
    %36 = vector.extract_strided_slice %10 {offsets = [13, 0], sizes = [1, 128], strides = [1, 1]} : vector<16x128xf32> to vector<1x128xf32>
    %37 = vector.extract_strided_slice %10 {offsets = [14, 0], sizes = [1, 128], strides = [1, 1]} : vector<16x128xf32> to vector<1x128xf32>
    %38 = vector.extract_strided_slice %10 {offsets = [15, 0], sizes = [1, 128], strides = [1, 1]} : vector<16x128xf32> to vector<1x128xf32>
    %cst_13 = arith.constant 0.000000e+00 : f32
    %39 = vector.broadcast %cst_13 : f32 to vector<1x32xf32>
    %cst_14 = arith.constant 0.000000e+00 : f32
    %40 = vector.broadcast %cst_14 : f32 to vector<1x32xf32>
    %cst_15 = arith.constant dense<0.000000e+00> : vector<1x128xf32>
    %41 = tpu.matmul %39, %1, %cst_15 {dimension_numbers = #tpu.dot_dimension_numbers<[1], [0], [0], [1], [0, 0, 1, 1], [], []>} : vector<1x32xf32>, vector<32x128xf32>, vector<1x128xf32> -> vector<1x128xf32>
    %42 = arith.addf %23, %41 : vector<1x128xf32>
    %43 = arith.mulf %42, %19 : vector<1x128xf32>
    %44 = math.tanh %43 : vector<1x128xf32>
    %45 = arith.mulf %44, %19 : vector<1x128xf32>
    %46 = arith.addf %45, %22 : vector<1x128xf32>
    %47 = vector.extract_strided_slice %46 {offsets = [0, 0], sizes = [1, 32], strides = [1, 1]} : vector<1x128xf32> to vector<1x32xf32>
    %48 = vector.extract_strided_slice %46 {offsets = [0, 32], sizes = [1, 32], strides = [1, 1]} : vector<1x128xf32> to vector<1x32xf32>
    %49 = vector.extract_strided_slice %46 {offsets = [0, 64], sizes = [1, 32], strides = [1, 1]} : vector<1x128xf32> to vector<1x32xf32>
    %50 = vector.extract_strided_slice %46 {offsets = [0, 96], sizes = [1, 32], strides = [1, 1]} : vector<1x128xf32> to vector<1x32xf32>
    %51 = arith.mulf %48, %40 : vector<1x32xf32>
    %52 = arith.mulf %47, %49 : vector<1x32xf32>
    %53 = arith.addf %51, %52 : vector<1x32xf32>
    %54 = math.tanh %53 : vector<1x32xf32>
    %55 = arith.mulf %50, %54 : vector<1x32xf32>
    %cst_16 = arith.constant dense<0.000000e+00> : vector<1x128xf32>
    %56 = tpu.matmul %55, %1, %cst_16 {dimension_numbers = #tpu.dot_dimension_numbers<[1], [0], [0], [1], [0, 0, 1, 1], [], []>} : vector<1x32xf32>, vector<32x128xf32>, vector<1x128xf32> -> vector<1x128xf32>
    %57 = arith.addf %24, %56 : vector<1x128xf32>
    %58 = arith.mulf %57, %19 : vector<1x128xf32>
    %59 = math.tanh %58 : vector<1x128xf32>
    %60 = arith.mulf %59, %19 : vector<1x128xf32>
    %61 = arith.addf %60, %22 : vector<1x128xf32>
    %62 = vector.extract_strided_slice %61 {offsets = [0, 0], sizes = [1, 32], strides = [1, 1]} : vector<1x128xf32> to vector<1x32xf32>
    %63 = vector.extract_strided_slice %61 {offsets = [0, 32], sizes = [1, 32], strides = [1, 1]} : vector<1x128xf32> to vector<1x32xf32>
    %64 = vector.extract_strided_slice %61 {offsets = [0, 64], sizes = [1, 32], strides = [1, 1]} : vector<1x128xf32> to vector<1x32xf32>
    %65 = vector.extract_strided_slice %61 {offsets = [0, 96], sizes = [1, 32], strides = [1, 1]} : vector<1x128xf32> to vector<1x32xf32>
    %66 = arith.mulf %63, %53 : vector<1x32xf32>
    %67 = arith.mulf %62, %64 : vector<1x32xf32>
    %68 = arith.addf %66, %67 : vector<1x32xf32>
    %69 = math.tanh %68 : vector<1x32xf32>
    %70 = arith.mulf %65, %69 : vector<1x32xf32>
    %cst_17 = arith.constant dense<0.000000e+00> : vector<1x128xf32>
    %71 = tpu.matmul %70, %1, %cst_17 {dimension_numbers = #tpu.dot_dimension_numbers<[1], [0], [0], [1], [0, 0, 1, 1], [], []>} : vector<1x32xf32>, vector<32x128xf32>, vector<1x128xf32> -> vector<1x128xf32>
    %72 = arith.addf %25, %71 : vector<1x128xf32>
    %73 = arith.mulf %72, %19 : vector<1x128xf32>
    %74 = math.tanh %73 : vector<1x128xf32>
    %75 = arith.mulf %74, %19 : vector<1x128xf32>
    %76 = arith.addf %75, %22 : vector<1x128xf32>
    %77 = vector.extract_strided_slice %76 {offsets = [0, 0], sizes = [1, 32], strides = [1, 1]} : vector<1x128xf32> to vector<1x32xf32>
    %78 = vector.extract_strided_slice %76 {offsets = [0, 32], sizes = [1, 32], strides = [1, 1]} : vector<1x128xf32> to vector<1x32xf32>
    %79 = vector.extract_strided_slice %76 {offsets = [0, 64], sizes = [1, 32], strides = [1, 1]} : vector<1x128xf32> to vector<1x32xf32>
    %80 = vector.extract_strided_slice %76 {offsets = [0, 96], sizes = [1, 32], strides = [1, 1]} : vector<1x128xf32> to vector<1x32xf32>
    %81 = arith.mulf %78, %68 : vector<1x32xf32>
    %82 = arith.mulf %77, %79 : vector<1x32xf32>
    %83 = arith.addf %81, %82 : vector<1x32xf32>
    %84 = math.tanh %83 : vector<1x32xf32>
    %85 = arith.mulf %80, %84 : vector<1x32xf32>
    %cst_18 = arith.constant dense<0.000000e+00> : vector<1x128xf32>
    %86 = tpu.matmul %85, %1, %cst_18 {dimension_numbers = #tpu.dot_dimension_numbers<[1], [0], [0], [1], [0, 0, 1, 1], [], []>} : vector<1x32xf32>, vector<32x128xf32>, vector<1x128xf32> -> vector<1x128xf32>
    %87 = arith.addf %26, %86 : vector<1x128xf32>
    %88 = arith.mulf %87, %19 : vector<1x128xf32>
    %89 = math.tanh %88 : vector<1x128xf32>
    %90 = arith.mulf %89, %19 : vector<1x128xf32>
    %91 = arith.addf %90, %22 : vector<1x128xf32>
    %92 = vector.extract_strided_slice %91 {offsets = [0, 0], sizes = [1, 32], strides = [1, 1]} : vector<1x128xf32> to vector<1x32xf32>
    %93 = vector.extract_strided_slice %91 {offsets = [0, 32], sizes = [1, 32], strides = [1, 1]} : vector<1x128xf32> to vector<1x32xf32>
    %94 = vector.extract_strided_slice %91 {offsets = [0, 64], sizes = [1, 32], strides = [1, 1]} : vector<1x128xf32> to vector<1x32xf32>
    %95 = vector.extract_strided_slice %91 {offsets = [0, 96], sizes = [1, 32], strides = [1, 1]} : vector<1x128xf32> to vector<1x32xf32>
    %96 = arith.mulf %93, %83 : vector<1x32xf32>
    %97 = arith.mulf %92, %94 : vector<1x32xf32>
    %98 = arith.addf %96, %97 : vector<1x32xf32>
    %99 = math.tanh %98 : vector<1x32xf32>
    %100 = arith.mulf %95, %99 : vector<1x32xf32>
    %cst_19 = arith.constant dense<0.000000e+00> : vector<1x128xf32>
    %101 = tpu.matmul %100, %1, %cst_19 {dimension_numbers = #tpu.dot_dimension_numbers<[1], [0], [0], [1], [0, 0, 1, 1], [], []>} : vector<1x32xf32>, vector<32x128xf32>, vector<1x128xf32> -> vector<1x128xf32>
    %102 = arith.addf %27, %101 : vector<1x128xf32>
    %103 = arith.mulf %102, %19 : vector<1x128xf32>
    %104 = math.tanh %103 : vector<1x128xf32>
    %105 = arith.mulf %104, %19 : vector<1x128xf32>
    %106 = arith.addf %105, %22 : vector<1x128xf32>
    %107 = vector.extract_strided_slice %106 {offsets = [0, 0], sizes = [1, 32], strides = [1, 1]} : vector<1x128xf32> to vector<1x32xf32>
    %108 = vector.extract_strided_slice %106 {offsets = [0, 32], sizes = [1, 32], strides = [1, 1]} : vector<1x128xf32> to vector<1x32xf32>
    %109 = vector.extract_strided_slice %106 {offsets = [0, 64], sizes = [1, 32], strides = [1, 1]} : vector<1x128xf32> to vector<1x32xf32>
    %110 = vector.extract_strided_slice %106 {offsets = [0, 96], sizes = [1, 32], strides = [1, 1]} : vector<1x128xf32> to vector<1x32xf32>
    %111 = arith.mulf %108, %98 : vector<1x32xf32>
    %112 = arith.mulf %107, %109 : vector<1x32xf32>
    %113 = arith.addf %111, %112 : vector<1x32xf32>
    %114 = math.tanh %113 : vector<1x32xf32>
    %115 = arith.mulf %110, %114 : vector<1x32xf32>
    %cst_20 = arith.constant dense<0.000000e+00> : vector<1x128xf32>
    %116 = tpu.matmul %115, %1, %cst_20 {dimension_numbers = #tpu.dot_dimension_numbers<[1], [0], [0], [1], [0, 0, 1, 1], [], []>} : vector<1x32xf32>, vector<32x128xf32>, vector<1x128xf32> -> vector<1x128xf32>
    %117 = arith.addf %28, %116 : vector<1x128xf32>
    %118 = arith.mulf %117, %19 : vector<1x128xf32>
    %119 = math.tanh %118 : vector<1x128xf32>
    %120 = arith.mulf %119, %19 : vector<1x128xf32>
    %121 = arith.addf %120, %22 : vector<1x128xf32>
    %122 = vector.extract_strided_slice %121 {offsets = [0, 0], sizes = [1, 32], strides = [1, 1]} : vector<1x128xf32> to vector<1x32xf32>
    %123 = vector.extract_strided_slice %121 {offsets = [0, 32], sizes = [1, 32], strides = [1, 1]} : vector<1x128xf32> to vector<1x32xf32>
    %124 = vector.extract_strided_slice %121 {offsets = [0, 64], sizes = [1, 32], strides = [1, 1]} : vector<1x128xf32> to vector<1x32xf32>
    %125 = vector.extract_strided_slice %121 {offsets = [0, 96], sizes = [1, 32], strides = [1, 1]} : vector<1x128xf32> to vector<1x32xf32>
    %126 = arith.mulf %123, %113 : vector<1x32xf32>
    %127 = arith.mulf %122, %124 : vector<1x32xf32>
    %128 = arith.addf %126, %127 : vector<1x32xf32>
    %129 = math.tanh %128 : vector<1x32xf32>
    %130 = arith.mulf %125, %129 : vector<1x32xf32>
    %cst_21 = arith.constant dense<0.000000e+00> : vector<1x128xf32>
    %131 = tpu.matmul %130, %1, %cst_21 {dimension_numbers = #tpu.dot_dimension_numbers<[1], [0], [0], [1], [0, 0, 1, 1], [], []>} : vector<1x32xf32>, vector<32x128xf32>, vector<1x128xf32> -> vector<1x128xf32>
    %132 = arith.addf %29, %131 : vector<1x128xf32>
    %133 = arith.mulf %132, %19 : vector<1x128xf32>
    %134 = math.tanh %133 : vector<1x128xf32>
    %135 = arith.mulf %134, %19 : vector<1x128xf32>
    %136 = arith.addf %135, %22 : vector<1x128xf32>
    %137 = vector.extract_strided_slice %136 {offsets = [0, 0], sizes = [1, 32], strides = [1, 1]} : vector<1x128xf32> to vector<1x32xf32>
    %138 = vector.extract_strided_slice %136 {offsets = [0, 32], sizes = [1, 32], strides = [1, 1]} : vector<1x128xf32> to vector<1x32xf32>
    %139 = vector.extract_strided_slice %136 {offsets = [0, 64], sizes = [1, 32], strides = [1, 1]} : vector<1x128xf32> to vector<1x32xf32>
    %140 = vector.extract_strided_slice %136 {offsets = [0, 96], sizes = [1, 32], strides = [1, 1]} : vector<1x128xf32> to vector<1x32xf32>
    %141 = arith.mulf %138, %128 : vector<1x32xf32>
    %142 = arith.mulf %137, %139 : vector<1x32xf32>
    %143 = arith.addf %141, %142 : vector<1x32xf32>
    %144 = math.tanh %143 : vector<1x32xf32>
    %145 = arith.mulf %140, %144 : vector<1x32xf32>
    %cst_22 = arith.constant dense<0.000000e+00> : vector<1x128xf32>
    %146 = tpu.matmul %145, %1, %cst_22 {dimension_numbers = #tpu.dot_dimension_numbers<[1], [0], [0], [1], [0, 0, 1, 1], [], []>} : vector<1x32xf32>, vector<32x128xf32>, vector<1x128xf32> -> vector<1x128xf32>
    %147 = arith.addf %30, %146 : vector<1x128xf32>
    %148 = arith.mulf %147, %19 : vector<1x128xf32>
    %149 = math.tanh %148 : vector<1x128xf32>
    %150 = arith.mulf %149, %19 : vector<1x128xf32>
    %151 = arith.addf %150, %22 : vector<1x128xf32>
    %152 = vector.extract_strided_slice %151 {offsets = [0, 0], sizes = [1, 32], strides = [1, 1]} : vector<1x128xf32> to vector<1x32xf32>
    %153 = vector.extract_strided_slice %151 {offsets = [0, 32], sizes = [1, 32], strides = [1, 1]} : vector<1x128xf32> to vector<1x32xf32>
    %154 = vector.extract_strided_slice %151 {offsets = [0, 64], sizes = [1, 32], strides = [1, 1]} : vector<1x128xf32> to vector<1x32xf32>
    %155 = vector.extract_strided_slice %151 {offsets = [0, 96], sizes = [1, 32], strides = [1, 1]} : vector<1x128xf32> to vector<1x32xf32>
    %156 = arith.mulf %153, %143 : vector<1x32xf32>
    %157 = arith.mulf %152, %154 : vector<1x32xf32>
    %158 = arith.addf %156, %157 : vector<1x32xf32>
    %159 = math.tanh %158 : vector<1x32xf32>
    %160 = arith.mulf %155, %159 : vector<1x32xf32>
    %cst_23 = arith.constant dense<0.000000e+00> : vector<1x128xf32>
    %161 = tpu.matmul %160, %1, %cst_23 {dimension_numbers = #tpu.dot_dimension_numbers<[1], [0], [0], [1], [0, 0, 1, 1], [], []>} : vector<1x32xf32>, vector<32x128xf32>, vector<1x128xf32> -> vector<1x128xf32>
    %162 = arith.addf %31, %161 : vector<1x128xf32>
    %163 = arith.mulf %162, %19 : vector<1x128xf32>
    %164 = math.tanh %163 : vector<1x128xf32>
    %165 = arith.mulf %164, %19 : vector<1x128xf32>
    %166 = arith.addf %165, %22 : vector<1x128xf32>
    %167 = vector.extract_strided_slice %166 {offsets = [0, 0], sizes = [1, 32], strides = [1, 1]} : vector<1x128xf32> to vector<1x32xf32>
    %168 = vector.extract_strided_slice %166 {offsets = [0, 32], sizes = [1, 32], strides = [1, 1]} : vector<1x128xf32> to vector<1x32xf32>
    %169 = vector.extract_strided_slice %166 {offsets = [0, 64], sizes = [1, 32], strides = [1, 1]} : vector<1x128xf32> to vector<1x32xf32>
    %170 = vector.extract_strided_slice %166 {offsets = [0, 96], sizes = [1, 32], strides = [1, 1]} : vector<1x128xf32> to vector<1x32xf32>
    %171 = arith.mulf %168, %158 : vector<1x32xf32>
    %172 = arith.mulf %167, %169 : vector<1x32xf32>
    %173 = arith.addf %171, %172 : vector<1x32xf32>
    %174 = math.tanh %173 : vector<1x32xf32>
    %175 = arith.mulf %170, %174 : vector<1x32xf32>
    %cst_24 = arith.constant dense<0.000000e+00> : vector<1x128xf32>
    %176 = tpu.matmul %175, %1, %cst_24 {dimension_numbers = #tpu.dot_dimension_numbers<[1], [0], [0], [1], [0, 0, 1, 1], [], []>} : vector<1x32xf32>, vector<32x128xf32>, vector<1x128xf32> -> vector<1x128xf32>
    %177 = arith.addf %32, %176 : vector<1x128xf32>
    %178 = arith.mulf %177, %19 : vector<1x128xf32>
    %179 = math.tanh %178 : vector<1x128xf32>
    %180 = arith.mulf %179, %19 : vector<1x128xf32>
    %181 = arith.addf %180, %22 : vector<1x128xf32>
    %182 = vector.extract_strided_slice %181 {offsets = [0, 0], sizes = [1, 32], strides = [1, 1]} : vector<1x128xf32> to vector<1x32xf32>
    %183 = vector.extract_strided_slice %181 {offsets = [0, 32], sizes = [1, 32], strides = [1, 1]} : vector<1x128xf32> to vector<1x32xf32>
    %184 = vector.extract_strided_slice %181 {offsets = [0, 64], sizes = [1, 32], strides = [1, 1]} : vector<1x128xf32> to vector<1x32xf32>
    %185 = vector.extract_strided_slice %181 {offsets = [0, 96], sizes = [1, 32], strides = [1, 1]} : vector<1x128xf32> to vector<1x32xf32>
    %186 = arith.mulf %183, %173 : vector<1x32xf32>
    %187 = arith.mulf %182, %184 : vector<1x32xf32>
    %188 = arith.addf %186, %187 : vector<1x32xf32>
    %189 = math.tanh %188 : vector<1x32xf32>
    %190 = arith.mulf %185, %189 : vector<1x32xf32>
    %cst_25 = arith.constant dense<0.000000e+00> : vector<1x128xf32>
    %191 = tpu.matmul %190, %1, %cst_25 {dimension_numbers = #tpu.dot_dimension_numbers<[1], [0], [0], [1], [0, 0, 1, 1], [], []>} : vector<1x32xf32>, vector<32x128xf32>, vector<1x128xf32> -> vector<1x128xf32>
    %192 = arith.addf %33, %191 : vector<1x128xf32>
    %193 = arith.mulf %192, %19 : vector<1x128xf32>
    %194 = math.tanh %193 : vector<1x128xf32>
    %195 = arith.mulf %194, %19 : vector<1x128xf32>
    %196 = arith.addf %195, %22 : vector<1x128xf32>
    %197 = vector.extract_strided_slice %196 {offsets = [0, 0], sizes = [1, 32], strides = [1, 1]} : vector<1x128xf32> to vector<1x32xf32>
    %198 = vector.extract_strided_slice %196 {offsets = [0, 32], sizes = [1, 32], strides = [1, 1]} : vector<1x128xf32> to vector<1x32xf32>
    %199 = vector.extract_strided_slice %196 {offsets = [0, 64], sizes = [1, 32], strides = [1, 1]} : vector<1x128xf32> to vector<1x32xf32>
    %200 = vector.extract_strided_slice %196 {offsets = [0, 96], sizes = [1, 32], strides = [1, 1]} : vector<1x128xf32> to vector<1x32xf32>
    %201 = arith.mulf %198, %188 : vector<1x32xf32>
    %202 = arith.mulf %197, %199 : vector<1x32xf32>
    %203 = arith.addf %201, %202 : vector<1x32xf32>
    %204 = math.tanh %203 : vector<1x32xf32>
    %205 = arith.mulf %200, %204 : vector<1x32xf32>
    %cst_26 = arith.constant dense<0.000000e+00> : vector<1x128xf32>
    %206 = tpu.matmul %205, %1, %cst_26 {dimension_numbers = #tpu.dot_dimension_numbers<[1], [0], [0], [1], [0, 0, 1, 1], [], []>} : vector<1x32xf32>, vector<32x128xf32>, vector<1x128xf32> -> vector<1x128xf32>
    %207 = arith.addf %34, %206 : vector<1x128xf32>
    %208 = arith.mulf %207, %19 : vector<1x128xf32>
    %209 = math.tanh %208 : vector<1x128xf32>
    %210 = arith.mulf %209, %19 : vector<1x128xf32>
    %211 = arith.addf %210, %22 : vector<1x128xf32>
    %212 = vector.extract_strided_slice %211 {offsets = [0, 0], sizes = [1, 32], strides = [1, 1]} : vector<1x128xf32> to vector<1x32xf32>
    %213 = vector.extract_strided_slice %211 {offsets = [0, 32], sizes = [1, 32], strides = [1, 1]} : vector<1x128xf32> to vector<1x32xf32>
    %214 = vector.extract_strided_slice %211 {offsets = [0, 64], sizes = [1, 32], strides = [1, 1]} : vector<1x128xf32> to vector<1x32xf32>
    %215 = vector.extract_strided_slice %211 {offsets = [0, 96], sizes = [1, 32], strides = [1, 1]} : vector<1x128xf32> to vector<1x32xf32>
    %216 = arith.mulf %213, %203 : vector<1x32xf32>
    %217 = arith.mulf %212, %214 : vector<1x32xf32>
    %218 = arith.addf %216, %217 : vector<1x32xf32>
    %219 = math.tanh %218 : vector<1x32xf32>
    %220 = arith.mulf %215, %219 : vector<1x32xf32>
    %cst_27 = arith.constant dense<0.000000e+00> : vector<1x128xf32>
    %221 = tpu.matmul %220, %1, %cst_27 {dimension_numbers = #tpu.dot_dimension_numbers<[1], [0], [0], [1], [0, 0, 1, 1], [], []>} : vector<1x32xf32>, vector<32x128xf32>, vector<1x128xf32> -> vector<1x128xf32>
    %222 = arith.addf %35, %221 : vector<1x128xf32>
    %223 = arith.mulf %222, %19 : vector<1x128xf32>
    %224 = math.tanh %223 : vector<1x128xf32>
    %225 = arith.mulf %224, %19 : vector<1x128xf32>
    %226 = arith.addf %225, %22 : vector<1x128xf32>
    %227 = vector.extract_strided_slice %226 {offsets = [0, 0], sizes = [1, 32], strides = [1, 1]} : vector<1x128xf32> to vector<1x32xf32>
    %228 = vector.extract_strided_slice %226 {offsets = [0, 32], sizes = [1, 32], strides = [1, 1]} : vector<1x128xf32> to vector<1x32xf32>
    %229 = vector.extract_strided_slice %226 {offsets = [0, 64], sizes = [1, 32], strides = [1, 1]} : vector<1x128xf32> to vector<1x32xf32>
    %230 = vector.extract_strided_slice %226 {offsets = [0, 96], sizes = [1, 32], strides = [1, 1]} : vector<1x128xf32> to vector<1x32xf32>
    %231 = arith.mulf %228, %218 : vector<1x32xf32>
    %232 = arith.mulf %227, %229 : vector<1x32xf32>
    %233 = arith.addf %231, %232 : vector<1x32xf32>
    %234 = math.tanh %233 : vector<1x32xf32>
    %235 = arith.mulf %230, %234 : vector<1x32xf32>
    %cst_28 = arith.constant dense<0.000000e+00> : vector<1x128xf32>
    %236 = tpu.matmul %235, %1, %cst_28 {dimension_numbers = #tpu.dot_dimension_numbers<[1], [0], [0], [1], [0, 0, 1, 1], [], []>} : vector<1x32xf32>, vector<32x128xf32>, vector<1x128xf32> -> vector<1x128xf32>
    %237 = arith.addf %36, %236 : vector<1x128xf32>
    %238 = arith.mulf %237, %19 : vector<1x128xf32>
    %239 = math.tanh %238 : vector<1x128xf32>
    %240 = arith.mulf %239, %19 : vector<1x128xf32>
    %241 = arith.addf %240, %22 : vector<1x128xf32>
    %242 = vector.extract_strided_slice %241 {offsets = [0, 0], sizes = [1, 32], strides = [1, 1]} : vector<1x128xf32> to vector<1x32xf32>
    %243 = vector.extract_strided_slice %241 {offsets = [0, 32], sizes = [1, 32], strides = [1, 1]} : vector<1x128xf32> to vector<1x32xf32>
    %244 = vector.extract_strided_slice %241 {offsets = [0, 64], sizes = [1, 32], strides = [1, 1]} : vector<1x128xf32> to vector<1x32xf32>
    %245 = vector.extract_strided_slice %241 {offsets = [0, 96], sizes = [1, 32], strides = [1, 1]} : vector<1x128xf32> to vector<1x32xf32>
    %246 = arith.mulf %243, %233 : vector<1x32xf32>
    %247 = arith.mulf %242, %244 : vector<1x32xf32>
    %248 = arith.addf %246, %247 : vector<1x32xf32>
    %249 = math.tanh %248 : vector<1x32xf32>
    %250 = arith.mulf %245, %249 : vector<1x32xf32>
    %cst_29 = arith.constant dense<0.000000e+00> : vector<1x128xf32>
    %251 = tpu.matmul %250, %1, %cst_29 {dimension_numbers = #tpu.dot_dimension_numbers<[1], [0], [0], [1], [0, 0, 1, 1], [], []>} : vector<1x32xf32>, vector<32x128xf32>, vector<1x128xf32> -> vector<1x128xf32>
    %252 = arith.addf %37, %251 : vector<1x128xf32>
    %253 = arith.mulf %252, %19 : vector<1x128xf32>
    %254 = math.tanh %253 : vector<1x128xf32>
    %255 = arith.mulf %254, %19 : vector<1x128xf32>
    %256 = arith.addf %255, %22 : vector<1x128xf32>
    %257 = vector.extract_strided_slice %256 {offsets = [0, 0], sizes = [1, 32], strides = [1, 1]} : vector<1x128xf32> to vector<1x32xf32>
    %258 = vector.extract_strided_slice %256 {offsets = [0, 32], sizes = [1, 32], strides = [1, 1]} : vector<1x128xf32> to vector<1x32xf32>
    %259 = vector.extract_strided_slice %256 {offsets = [0, 64], sizes = [1, 32], strides = [1, 1]} : vector<1x128xf32> to vector<1x32xf32>
    %260 = vector.extract_strided_slice %256 {offsets = [0, 96], sizes = [1, 32], strides = [1, 1]} : vector<1x128xf32> to vector<1x32xf32>
    %261 = arith.mulf %258, %248 : vector<1x32xf32>
    %262 = arith.mulf %257, %259 : vector<1x32xf32>
    %263 = arith.addf %261, %262 : vector<1x32xf32>
    %264 = math.tanh %263 : vector<1x32xf32>
    %265 = arith.mulf %260, %264 : vector<1x32xf32>
    %cst_30 = arith.constant dense<0.000000e+00> : vector<1x128xf32>
    %266 = tpu.matmul %265, %1, %cst_30 {dimension_numbers = #tpu.dot_dimension_numbers<[1], [0], [0], [1], [0, 0, 1, 1], [], []>} : vector<1x32xf32>, vector<32x128xf32>, vector<1x128xf32> -> vector<1x128xf32>
    %267 = arith.addf %38, %266 : vector<1x128xf32>
    %268 = arith.mulf %267, %19 : vector<1x128xf32>
    %269 = math.tanh %268 : vector<1x128xf32>
    %270 = arith.mulf %269, %19 : vector<1x128xf32>
    %271 = arith.addf %270, %22 : vector<1x128xf32>
    %272 = vector.extract_strided_slice %271 {offsets = [0, 0], sizes = [1, 32], strides = [1, 1]} : vector<1x128xf32> to vector<1x32xf32>
    %273 = vector.extract_strided_slice %271 {offsets = [0, 32], sizes = [1, 32], strides = [1, 1]} : vector<1x128xf32> to vector<1x32xf32>
    %274 = vector.extract_strided_slice %271 {offsets = [0, 64], sizes = [1, 32], strides = [1, 1]} : vector<1x128xf32> to vector<1x32xf32>
    %275 = vector.extract_strided_slice %271 {offsets = [0, 96], sizes = [1, 32], strides = [1, 1]} : vector<1x128xf32> to vector<1x32xf32>
    %276 = arith.mulf %273, %263 : vector<1x32xf32>
    %277 = arith.mulf %272, %274 : vector<1x32xf32>
    %278 = arith.addf %276, %277 : vector<1x32xf32>
    %279 = math.tanh %278 : vector<1x32xf32>
    %280 = arith.mulf %275, %279 : vector<1x32xf32>
    %cst_31 = arith.constant dense<0.000000e+00> : vector<1x128xf32>
    %281 = tpu.matmul %280, %3, %cst_31 {dimension_numbers = #tpu.dot_dimension_numbers<[1], [0], [0], [1], [0, 0, 1, 1], [], []>} : vector<1x32xf32>, vector<32x128xf32>, vector<1x128xf32> -> vector<1x128xf32>
    %282 = arith.addf %281, %4 : vector<1x128xf32>
    %283 = arith.negf %282 : vector<1x128xf32>
    %284 = math.exp %283 : vector<1x128xf32>
    %cst_32 = arith.constant 1.000000e+00 : f32
    %285 = vector.broadcast %cst_32 : f32 to vector<1x128xf32>
    %286 = arith.addf %285, %284 : vector<1x128xf32>
    %287 = arith.divf %285, %286 : vector<1x128xf32>
    %cst_33 = arith.constant dense<0xFF800000> : vector<1xf32>
    %288 = vector.multi_reduction <maximumf>, %6, %cst_33 [1] : vector<1x128xf32> to vector<1xf32>
    %289 = vector.shape_cast %288 : vector<1xf32> to vector<1x1xf32>
    %290 = arith.mulf %287, %5 : vector<1x128xf32>
    %cst_34 = arith.constant dense<0.000000e+00> : vector<1xf32>
    %291 = vector.multi_reduction <add>, %290, %cst_34 [1] : vector<1x128xf32> to vector<1xf32>
    %292 = vector.shape_cast %291 : vector<1xf32> to vector<1x1xf32>
    %293 = arith.addf %292, %289 : vector<1x1xf32>
    %294 = arith.negf %293 : vector<1x1xf32>
    %295 = math.exp %294 : vector<1x1xf32>
    %cst_35 = arith.constant 1.000000e+00 : f32
    %296 = vector.broadcast %cst_35 : f32 to vector<1x1xf32>
    %297 = arith.addf %296, %295 : vector<1x1xf32>
    %298 = arith.divf %296, %297 : vector<1x1xf32>
    %c0_36 = arith.constant 0 : index
    %c0_37 = arith.constant 0 : index
    %299 = vector.load %arg2[%c0_36, %c0_37] : memref<1x1xf32, #tpu.memory_space<vmem>>, vector<1x1xf32>
    tpu.vector_store %arg2[%c0_36, %c0_37], %298 {strides = array<i32>} : memref<1x1xf32, #tpu.memory_space<vmem>>, vector<1x1xf32>,
    return
  }
}

</mosaic_0001>

<llo_original>
// kernel: tpu_custom_call.1
$region0: #{tpu_custom_call.1}
  #allocation0 [shape = 'u32[]', space=smem, size = 0x4, offset = 0x4, fixed_abs, tag = 'smem constant byte address 0x4 - core index']
  #allocation1 [shape = 'u32[144,128]{1,0:T(1,128)}', space=vmem, size = 0x12000, scoped, tag = 'internal scratch']
  %s0 = inlined_call_operand.hbm [shape: f32[16,16], index: 0, kind: input, shape index: {}]
  %s1 = inlined_call_operand.hbm [shape: f32[112,128], index: 1, kind: input, shape index: {}]
  %s2 = inlined_call_operand.hbm [shape: f32[1,1], index: 2, kind: output, shape index: {}]
  %s3 = sld [smem:[#allocation0]]
  $region26: #{tpu_custom_call.1} parent=0
    _
  %s5 = ssub.s32 1, %s3
  %s6 = scalar_select 0, %s5, %s3
  $region1: #{tpu_custom_call.1} parent=0
    #allocation2 [shape = 'u8[8192]{0}', space=vmem, size = 0x2000, scoped, tag = 'input window, operand 0, single buffered']
    #allocation3 [shape = 's32[1]{0}', space=sflag, size = 0x4, scoped, tag = 'scoped memory for tpu_custom_call.1']
    #allocation4 [shape = 's32[1]{0}', space=sflag, size = 0x4, scoped, tag = 'scoped memory for tpu_custom_call.1']
    #allocation5 [shape = 'u8[57344]{0}', space=vmem, size = 0xe000, scoped, tag = 'input window, operand 1, single buffered']
    #allocation6 [shape = 's32[1]{0}', space=sflag, size = 0x4, scoped, tag = 'scoped memory for tpu_custom_call.1']
    #allocation7 [shape = 'u8[512]{0}', space=vmem, size = 0x400, scoped, tag = 'output window, operand 0, single buffered']
    %7 = vsyncpa [#allocation3], 0
    %8 = vsyncpa [#allocation6], 0
    %9 = vsyncpa [#allocation4], 0
    // Predicated region
    $region2: #{tpu_custom_call.1} parent=1 // pred_check
      _
    $region3: #{tpu_custom_call.1} parent=1 // pred_check_branch
      %11 = sbr.rel (0) target = $region5
    $region4: #{tpu_custom_call.1} parent=1 // pred_region
      %s13 = ssub.s32 256, 256
      %14 = vsyncadd [#allocation3], %s13
      %s15 = sshll.u32 [#allocation2], 4
      %s16 = int_to_ptr.vmem [resolvable:$true] %s15
      %21 = dma.hbm_to_vmem [thread:$0]  %s0, 256, %s16, [#allocation3], 128, 128, 8
    $region5: #{tpu_custom_call.1} parent=1 // pred_fallthru
      _
    // Predicated region
    $region6: #{tpu_custom_call.1} parent=1 // pred_check
      _
    $region7: #{tpu_custom_call.1} parent=1 // pred_check_branch
      %23 = sbr.rel (0) target = $region9
    $region8: #{tpu_custom_call.1} parent=1 // pred_region
      %s25 = ssub.s32 1792, 1792
      %26 = vsyncadd [#allocation6], %s25
      %s27 = sshll.u32 [#allocation5], 4
      %s28 = int_to_ptr.vmem [resolvable:$true] %s27
      %33 = dma.hbm_to_vmem [thread:$0]  %s1, 1792, %s28, [#allocation6], 128, 128, 8
    $region9: #{tpu_custom_call.1} parent=1 // pred_fallthru
      _
    // Predicated region
    $region10: #{tpu_custom_call.1} parent=1 // pred_check
      _
    $region11: #{tpu_custom_call.1} parent=1 // pred_check_branch
      %35 = sbr.rel (0) target = $region13
    $region12: #{tpu_custom_call.1} parent=1 // pred_region
      %36 = dma.done [#allocation3], 256
    $region13: #{tpu_custom_call.1} parent=1 // pred_fallthru
      _
    // Predicated region
    $region14: #{tpu_custom_call.1} parent=1 // pred_check
      _
    $region15: #{tpu_custom_call.1} parent=1 // pred_check_branch
      %38 = sbr.rel (0) target = $region17
    $region16: #{tpu_custom_call.1} parent=1 // pred_region
      %39 = dma.done [#allocation6], 1792
    $region17: #{tpu_custom_call.1} parent=1 // pred_fallthru
      _
    %v40 = vld [vmem:[#allocation5] sm:$0xff]
    %v41 = vld [vmem:[#allocation5 + $0x8] sm:$0xff]
    %v42 = vld [vmem:[#allocation5 + $0x10] sm:$0xff]
    %v43 = vld [vmem:[#allocation5 + $0x18] sm:$0xff]
    %v44 = vld [vmem:[#allocation5 + $0x20] sm:$0xff]
    %v45 = vld [vmem:[#allocation5 + $0x28] sm:$0xff]
    %v46 = vld [vmem:[#allocation5 + $0x30] sm:$0x1]
    %v47 = vld [vmem:[#allocation5 + $0x38] sm:$0xff]
    %v48 = vld [vmem:[#allocation5 + $0x40] sm:$0xff]
    %v49 = vld [vmem:[#allocation5 + $0x48] sm:$0xff]
    %v50 = vld [vmem:[#allocation5 + $0x50] sm:$0xff]
    %v51 = vld [vmem:[#allocation5 + $0x58] sm:$0x1]
    %v52 = vld [vmem:[#allocation5 + $0x60] sm:$0x1]
    %v53 = vld [vmem:[#allocation5 + $0x68] sm:$0x1]
    %v54 = vld [vmem:[#allocation2] sm:$0xff]
    %v55 = vld [vmem:[#allocation2 + $0x8] sm:$0xff]
    %v56 = vlaneseq
    %v57 = vshrl.u32 %v56, 7
    %v58 = vsub.s32 0, %v57
    %v59 = vrot.slane %v46, %v58
    %vm60 = vcmask 130048
    %v62 = vsel %vm60, %v54, 0
    %v65 = vsel %vm60, %v55, 0
    %67 = vmatprep.subr.mxu0 0.0
    %68 = vmatpush1.msra.mxu0 0.0
    %69 = vmatprep.subr.mxu0 0.0
    %70 = vmatpush1.msra.mxu0 0.0
    %71 = vmatprep.subr.mxu0 0.0
    %72 = vmatpush1.msra.mxu0 0.0
    %73 = vmatprep.subr.mxu0 0.0
    %74 = vmatpush1.msra.mxu0 0.0
    %75 = vmatprep.subr.mxu0 0.0
    %76 = vmatpush1.msra.mxu0 0.0
    %77 = vmatprep.subr.mxu0 0.0
    %78 = vmatpush1.msra.mxu0 0.0
    %79 = vmatprep.subr.mxu0 0.0
    %80 = vmatpush1.msra.mxu0 0.0
    %81 = vmatprep.subr.mxu0 0.0
    %82 = vmatpush1.msra.mxu0 0.0
    %83 = vmatprep.subr.mxu0 0.0
    %84 = vmatpush1.msra.mxu0 0.0
    %85 = vmatprep.subr.mxu0 0.0
    %86 = vmatpush1.msra.mxu0 0.0
    %87 = vmatprep.subr.mxu0 0.0
    %88 = vmatpush1.msra.mxu0 0.0
    %89 = vmatprep.subr.mxu0 0.0
    %90 = vmatpush1.msra.mxu0 0.0
    %91 = vmatprep.subr.mxu0 0.0
    %92 = vmatpush1.msra.mxu0 0.0
    %93 = vmatprep.subr.mxu0 0.0
    %94 = vmatpush1.msra.mxu0 0.0
    %95 = vmatprep.subr.mxu0 0.0
    %96 = vmatpush1.msra.mxu0 %v41
    %97 = vmatprep.subr.mxu0 0.0
    %98 = vmatpush1.msra.mxu0 %v40
    %99 = vmatprep.subr.mxu0 0.0
    %100 = vmatpush2.msra.mxu0 0.0
    %101 = vmatprep.subr.mxu0 0.0
    %102 = vmatpush2.msra.mxu0 0.0
    %103 = vmatprep.subr.mxu0 0.0
    %104 = vmatpush2.msra.mxu0 0.0
    %105 = vmatprep.subr.mxu0 0.0
    %106 = vmatpush2.msra.mxu0 0.0
    %107 = vmatprep.subr.mxu0 0.0
    %108 = vmatpush2.msra.mxu0 0.0
    %109 = vmatprep.subr.mxu0 0.0
    %110 = vmatpush2.msra.mxu0 0.0
    %111 = vmatprep.subr.mxu0 0.0
    %112 = vmatpush2.msra.mxu0 0.0
    %113 = vmatprep.subr.mxu0 0.0
    %114 = vmatpush2.msra.mxu0 0.0
    %115 = vmatprep.subr.mxu0 0.0
    %116 = vmatpush2.msra.mxu0 0.0
    %117 = vmatprep.subr.mxu0 0.0
    %118 = vmatpush2.msra.mxu0 0.0
    %119 = vmatprep.subr.mxu0 0.0
    %120 = vmatpush2.msra.mxu0 0.0
    %121 = vmatprep.subr.mxu0 0.0
    %122 = vmatpush2.msra.mxu0 0.0
    %123 = vmatprep.subr.mxu0 0.0
    %124 = vmatpush2.msra.mxu0 0.0
    %125 = vmatprep.subr.mxu0 0.0
    %126 = vmatpush2.msra.mxu0 0.0
    %127 = vmatprep.subr.mxu0 0.0
    %128 = vmatpush2.msra.mxu0 0.0
    %129 = vmatprep.subr.mxu0 0.0
    %130 = vmatpush2.msra.mxu0 0.0
    %131 = vmatprep.mubr.f32.mxu0 0.0
    %132 = vmatmul.mubr.f32.gmra.mxu0 %v62
    %v133 = vpop.f32.mrf.mxu0
    %v134 = vadd.f32 %v59, %v133
    %v135 = vpop.f32.mrf.mxu0
    %136 = vmatprep.mubr.f32.mxu0 0.0
    %137 = vmatmul.mubr.f32.gmra.mxu0 %v65
    %v138 = vpop.f32.mrf.mxu0
    %v139 = vadd.f32 %v59, %v138
    %v140 = vpop.f32.mrf.mxu0
    %141 = vdwg.mxu0
    %v142 = vlaneseq
    %v143 = vand.u32 %v142, 127
    %vm144 = vcmp.ge.s32.totalorder %v143, 64
    %vm145 = vcmp.lt.s32.totalorder %v143, 96
    %vm146 = vmand %vm144, %vm145
    %v147 = vsel %vm146, 1.0, 0.5
    %v148 = vsel %vm146, 0.0, 0.5
    %vm149 = vcmask 261120
    %v151 = vsel %vm149, 0.0, 0
    %153 = vmatprep.subr.mxu0 0.0
    %154 = vmatpush1.msra.mxu0 0.0
    %155 = vmatprep.subr.mxu0 0.0
    %156 = vmatpush1.msra.mxu0 0.0
    %157 = vmatprep.subr.mxu0 0.0
    %158 = vmatpush1.msra.mxu0 0.0
    %159 = vmatprep.subr.mxu0 0.0
    %160 = vmatpush1.msra.mxu0 0.0
    %161 = vmatprep.subr.mxu0 0.0
    %162 = vmatpush1.msra.mxu0 0.0
    %163 = vmatprep.subr.mxu0 0.0
    %164 = vmatpush1.msra.mxu0 0.0
    %165 = vmatprep.subr.mxu0 0.0
    %166 = vmatpush1.msra.mxu0 0.0
    %167 = vmatprep.subr.mxu0 0.0
    %168 = vmatpush1.msra.mxu0 0.0
    %169 = vmatprep.subr.mxu0 0.0
    %170 = vmatpush1.msra.mxu0 0.0
    %171 = vmatprep.subr.mxu0 0.0
    %172 = vmatpush1.msra.mxu0 0.0
    %173 = vmatprep.subr.mxu0 0.0
    %174 = vmatpush1.msra.mxu0 0.0
    %175 = vmatprep.subr.mxu0 0.0
    %176 = vmatpush1.msra.mxu0 0.0
    %177 = vmatprep.subr.mxu0 0.0
    %178 = vmatpush1.msra.mxu0 %v45
    %179 = vmatprep.subr.mxu0 0.0
    %180 = vmatpush1.msra.mxu0 %v44
    %181 = vmatprep.subr.mxu0 0.0
    %182 = vmatpush1.msra.mxu0 %v43
    %183 = vmatprep.subr.mxu0 0.0
    %184 = vmatpush1.msra.mxu0 %v42
    %185 = vmatprep.subr.mxu0 0.0
    %186 = vmatpush2.msra.mxu0 0.0
    %187 = vmatprep.subr.mxu0 0.0
    %188 = vmatpush2.msra.mxu0 0.0
    %189 = vmatprep.subr.mxu0 0.0
    %190 = vmatpush2.msra.mxu0 0.0
    %191 = vmatprep.subr.mxu0 0.0
    %192 = vmatpush2.msra.mxu0 0.0
    %193 = vmatprep.subr.mxu0 0.0
    %194 = vmatpush2.msra.mxu0 0.0
    %195 = vmatprep.subr.mxu0 0.0
    %196 = vmatpush2.msra.mxu0 0.0
    %197 = vmatprep.subr.mxu0 0.0
    %198 = vmatpush2.msra.mxu0 0.0
    %199 = vmatprep.subr.mxu0 0.0
    %200 = vmatpush2.msra.mxu0 0.0
    %201 = vmatprep.subr.mxu0 0.0
    %202 = vmatpush2.msra.mxu0 0.0
    %203 = vmatprep.subr.mxu0 0.0
    %204 = vmatpush2.msra.mxu0 0.0
    %205 = vmatprep.subr.mxu0 0.0
    %206 = vmatpush2.msra.mxu0 0.0
    %207 = vmatprep.subr.mxu0 0.0
    %208 = vmatpush2.msra.mxu0 0.0
    %209 = vmatprep.subr.mxu0 0.0
    %210 = vmatpush2.msra.mxu0 0.0
    %211 = vmatprep.subr.mxu0 0.0
    %212 = vmatpush2.msra.mxu0 0.0
    %213 = vmatprep.subr.mxu0 0.0
    %214 = vmatpush2.msra.mxu0 0.0
    %215 = vmatprep.subr.mxu0 0.0
    %216 = vmatpush2.msra.mxu0 0.0
    %217 = vmatprep.mubr.f32.mxu0 0.0
    %218 = vmatmul.mubr.f32.gmra.mxu0 %v151
    %v219 = vpop.f32.mrf.mxu0
    %v220 = vadd.f32 0.0, %v219
    %v221 = vpop.f32.mrf.mxu0
    %222 = vdwg.mxu0
    %v223 = vadd.f32 %v134, %v220
    %v224 = vmul.f32 %v223, %v147
    %v225 = vtanh.pop %v224
    %v226 = vmul.f32 %v225, %v147
    %v227 = vadd.f32 %v226, %v148
    %v228 = vmul.f32 %v227, 0.0
    %230 = vrot.lane.b32.xlu0 %v227, 64
    %v231 = vpop.permute.xlu0 %230
    %v233 = vmul.f32 %v227, %v231
    %235 = vrot.lane.b32.xlu0 %v233, 32
    %v236 = vpop.permute.xlu0 %235
    %v238 = vadd.f32 %v228, %v236
    %v239 = vtanh.pop %v238
    %241 = vrot.lane.b32.xlu0 %v239, 64
    %v242 = vpop.permute.xlu0 %241
    %v244 = vmul.f32 %v227, %v242
    %246 = vrot.lane.b32.xlu0 %v244, 32
    %v247 = vpop.permute.xlu0 %246
    %v248 = vsel %vm149, %v247, 0
    %250 = vmatprep.subr.mxu0 0.0
    %251 = vmatpush1.msra.mxu0 0.0
    %252 = vmatprep.subr.mxu0 0.0
    %253 = vmatpush1.msra.mxu0 0.0
    %254 = vmatprep.subr.mxu0 0.0
    %255 = vmatpush1.msra.mxu0 0.0
    %256 = vmatprep.subr.mxu0 0.0
    %257 = vmatpush1.msra.mxu0 0.0
    %258 = vmatprep.subr.mxu0 0.0
    %259 = vmatpush1.msra.mxu0 0.0
    %260 = vmatprep.subr.mxu0 0.0
    %261 = vmatpush1.msra.mxu0 0.0
    %262 = vmatprep.subr.mxu0 0.0
    %263 = vmatpush1.msra.mxu0 0.0
    %264 = vmatprep.subr.mxu0 0.0
    %265 = vmatpush1.msra.mxu0 0.0
    %266 = vmatprep.subr.mxu0 0.0
    %267 = vmatpush1.msra.mxu0 0.0
    %268 = vmatprep.subr.mxu0 0.0
    %269 = vmatpush1.msra.mxu0 0.0
    %270 = vmatprep.subr.mxu0 0.0
    %271 = vmatpush1.msra.mxu0 0.0
    %272 = vmatprep.subr.mxu0 0.0
    %273 = vmatpush1.msra.mxu0 0.0
    %274 = vmatprep.subr.mxu0 0.0
    %275 = vmatpush1.msra.mxu0 %v45
    %276 = vmatprep.subr.mxu0 0.0
    %277 = vmatpush1.msra.mxu0 %v44
    %278 = vmatprep.subr.mxu0 0.0
    %279 = vmatpush1.msra.mxu0 %v43
    %280 = vmatprep.subr.mxu0 0.0
    %281 = vmatpush1.msra.mxu0 %v42
    %282 = vmatprep.subr.mxu0 0.0
    %283 = vmatpush2.msra.mxu0 0.0
    %284 = vmatprep.subr.mxu0 0.0
    %285 = vmatpush2.msra.mxu0 0.0
    %286 = vmatprep.subr.mxu0 0.0
    %287 = vmatpush2.msra.mxu0 0.0
    %288 = vmatprep.subr.mxu0 0.0
    %289 = vmatpush2.msra.mxu0 0.0
    %290 = vmatprep.subr.mxu0 0.0
    %291 = vmatpush2.msra.mxu0 0.0
    %292 = vmatprep.subr.mxu0 0.0
    %293 = vmatpush2.msra.mxu0 0.0
    %294 = vmatprep.subr.mxu0 0.0
    %295 = vmatpush2.msra.mxu0 0.0
    %296 = vmatprep.subr.mxu0 0.0
    %297 = vmatpush2.msra.mxu0 0.0
    %298 = vmatprep.subr.mxu0 0.0
    %299 = vmatpush2.msra.mxu0 0.0
    %300 = vmatprep.subr.mxu0 0.0
    %301 = vmatpush2.msra.mxu0 0.0
    %302 = vmatprep.subr.mxu0 0.0
    %303 = vmatpush2.msra.mxu0 0.0
    %304 = vmatprep.subr.mxu0 0.0
    %305 = vmatpush2.msra.mxu0 0.0
    %306 = vmatprep.subr.mxu0 0.0
    %307 = vmatpush2.msra.mxu0 0.0
    %308 = vmatprep.subr.mxu0 0.0
    %309 = vmatpush2.msra.mxu0 0.0
    %310 = vmatprep.subr.mxu0 0.0
    %311 = vmatpush2.msra.mxu0 0.0
    %312 = vmatprep.subr.mxu0 0.0
    %313 = vmatpush2.msra.mxu0 0.0
    %314 = vmatprep.mubr.f32.mxu0 0.0
    %315 = vmatmul.mubr.f32.gmra.mxu0 %v248
    %v316 = vpop.f32.mrf.mxu0
    %v317 = vadd.f32 0.0, %v316
    %v318 = vpop.f32.mrf.mxu0
    %319 = vdwg.mxu0
    %v321 = vrot.slane %v317, 7
    %v323 = vadd.f32 %v134, %v321
    %v324 = vmul.f32 %v323, %v147
    %v325 = vtanh.pop %v324
    %v326 = vmul.f32 %v325, %v147
    %v327 = vadd.f32 %v326, %v148
    %v329 = vrot.slane %v238, 7
    %v331 = vmul.f32 %v327, %v329
    %333 = vrot.lane.b32.xlu0 %v327, 64
    %v334 = vpop.permute.xlu0 %333
    %v336 = vmul.f32 %v327, %v334
    %338 = vrot.lane.b32.xlu0 %v336, 32
    %v339 = vpop.permute.xlu0 %338
    %v341 = vadd.f32 %v331, %v339
    %v342 = vtanh.pop %v341
    %344 = vrot.lane.b32.xlu0 %v342, 64
    %v345 = vpop.permute.xlu0 %344
    %v347 = vmul.f32 %v327, %v345
    %v349 = vrot.slane %v347, 1
    %350 = vrot.lane.b32.xlu0 %v349, 32
    %v351 = vpop.permute.xlu0 %350
    %v352 = vsel %vm149, %v351, 0
    %354 = vmatprep.subr.mxu0 0.0
    %355 = vmatpush1.msra.mxu0 0.0
    %356 = vmatprep.subr.mxu0 0.0
    %357 = vmatpush1.msra.mxu0 0.0
    %358 = vmatprep.subr.mxu0 0.0
    %359 = vmatpush1.msra.mxu0 0.0
    %360 = vmatprep.subr.mxu0 0.0
    %361 = vmatpush1.msra.mxu0 0.0
    %362 = vmatprep.subr.mxu0 0.0
    %363 = vmatpush1.msra.mxu0 0.0
    %364 = vmatprep.subr.mxu0 0.0
    %365 = vmatpush1.msra.mxu0 0.0
    %366 = vmatprep.subr.mxu0 0.0
    %367 = vmatpush1.msra.mxu0 0.0
    %368 = vmatprep.subr.mxu0 0.0
    %369 = vmatpush1.msra.mxu0 0.0
    %370 = vmatprep.subr.mxu0 0.0
    %371 = vmatpush1.msra.mxu0 0.0
    %372 = vmatprep.subr.mxu0 0.0
    %373 = vmatpush1.msra.mxu0 0.0
    %374 = vmatprep.subr.mxu0 0.0
    %375 = vmatpush1.msra.mxu0 0.0
    %376 = vmatprep.subr.mxu0 0.0
    %377 = vmatpush1.msra.mxu0 0.0
    %378 = vmatprep.subr.mxu0 0.0
    %379 = vmatpush1.msra.mxu0 %v45
    %380 = vmatprep.subr.mxu0 0.0
    %381 = vmatpush1.msra.mxu0 %v44
    %382 = vmatprep.subr.mxu0 0.0
    %383 = vmatpush1.msra.mxu0 %v43
    %384 = vmatprep.subr.mxu0 0.0
    %385 = vmatpush1.msra.mxu0 %v42
    %386 = vmatprep.subr.mxu0 0.0
    %387 = vmatpush2.msra.mxu0 0.0
    %388 = vmatprep.subr.mxu0 0.0
    %389 = vmatpush2.msra.mxu0 0.0
    %390 = vmatprep.subr.mxu0 0.0
    %391 = vmatpush2.msra.mxu0 0.0
    %392 = vmatprep.subr.mxu0 0.0
    %393 = vmatpush2.msra.mxu0 0.0
    %394 = vmatprep.subr.mxu0 0.0
    %395 = vmatpush2.msra.mxu0 0.0
    %396 = vmatprep.subr.mxu0 0.0
    %397 = vmatpush2.msra.mxu0 0.0
    %398 = vmatprep.subr.mxu0 0.0
    %399 = vmatpush2.msra.mxu0 0.0
    %400 = vmatprep.subr.mxu0 0.0
    %401 = vmatpush2.msra.mxu0 0.0
    %402 = vmatprep.subr.mxu0 0.0
    %403 = vmatpush2.msra.mxu0 0.0
    %404 = vmatprep.subr.mxu0 0.0
    %405 = vmatpush2.msra.mxu0 0.0
    %406 = vmatprep.subr.mxu0 0.0
    %407 = vmatpush2.msra.mxu0 0.0
    %408 = vmatprep.subr.mxu0 0.0
    %409 = vmatpush2.msra.mxu0 0.0
    %410 = vmatprep.subr.mxu0 0.0
    %411 = vmatpush2.msra.mxu0 0.0
    %412 = vmatprep.subr.mxu0 0.0
    %413 = vmatpush2.msra.mxu0 0.0
    %414 = vmatprep.subr.mxu0 0.0
    %415 = vmatpush2.msra.mxu0 0.0
    %416 = vmatprep.subr.mxu0 0.0
    %417 = vmatpush2.msra.mxu0 0.0
    %418 = vmatprep.mubr.f32.mxu0 0.0
    %419 = vmatmul.mubr.f32.gmra.mxu0 %v352
    %v420 = vpop.f32.mrf.mxu0
    %v421 = vadd.f32 0.0, %v420
    %v422 = vpop.f32.mrf.mxu0
    %423 = vdwg.mxu0
    %v425 = vrot.slane %v421, 6
    %v427 = vadd.f32 %v134, %v425
    %v428 = vmul.f32 %v427, %v147
    %v429 = vtanh.pop %v428
    %v430 = vmul.f32 %v429, %v147
    %v431 = vadd.f32 %v430, %v148
    %v433 = vrot.slane %v341, 7
    %v435 = vmul.f32 %v431, %v433
    %437 = vrot.lane.b32.xlu0 %v431, 64
    %v438 = vpop.permute.xlu0 %437
    %v440 = vmul.f32 %v431, %v438
    %442 = vrot.lane.b32.xlu0 %v440, 32
    %v443 = vpop.permute.xlu0 %442
    %v445 = vadd.f32 %v435, %v443
    %v446 = vtanh.pop %v445
    %448 = vrot.lane.b32.xlu0 %v446, 64
    %v449 = vpop.permute.xlu0 %448
    %v451 = vmul.f32 %v431, %v449
    %v453 = vrot.slane %v451, 2
    %454 = vrot.lane.b32.xlu0 %v453, 32
    %v455 = vpop.permute.xlu0 %454
    %v456 = vsel %vm149, %v455, 0
    %458 = vmatprep.subr.mxu0 0.0
    %459 = vmatpush1.msra.mxu0 0.0
    %460 = vmatprep.subr.mxu0 0.0
    %461 = vmatpush1.msra.mxu0 0.0
    %462 = vmatprep.subr.mxu0 0.0
    %463 = vmatpush1.msra.mxu0 0.0
    %464 = vmatprep.subr.mxu0 0.0
    %465 = vmatpush1.msra.mxu0 0.0
    %466 = vmatprep.subr.mxu0 0.0
    %467 = vmatpush1.msra.mxu0 0.0
    %468 = vmatprep.subr.mxu0 0.0
    %469 = vmatpush1.msra.mxu0 0.0
    %470 = vmatprep.subr.mxu0 0.0
    %471 = vmatpush1.msra.mxu0 0.0
    %472 = vmatprep.subr.mxu0 0.0
    %473 = vmatpush1.msra.mxu0 0.0
    %474 = vmatprep.subr.mxu0 0.0
    %475 = vmatpush1.msra.mxu0 0.0
    %476 = vmatprep.subr.mxu0 0.0
    %477 = vmatpush1.msra.mxu0 0.0
    %478 = vmatprep.subr.mxu0 0.0
    %479 = vmatpush1.msra.mxu0 0.0
    %480 = vmatprep.subr.mxu0 0.0
    %481 = vmatpush1.msra.mxu0 0.0
    %482 = vmatprep.subr.mxu0 0.0
    %483 = vmatpush1.msra.mxu0 %v45
    %484 = vmatprep.subr.mxu0 0.0
    %485 = vmatpush1.msra.mxu0 %v44
    %486 = vmatprep.subr.mxu0 0.0
    %487 = vmatpush1.msra.mxu0 %v43
    %488 = vmatprep.subr.mxu0 0.0
    %489 = vmatpush1.msra.mxu0 %v42
    %490 = vmatprep.subr.mxu0 0.0
    %491 = vmatpush2.msra.mxu0 0.0
    %492 = vmatprep.subr.mxu0 0.0
    %493 = vmatpush2.msra.mxu0 0.0
    %494 = vmatprep.subr.mxu0 0.0
    %495 = vmatpush2.msra.mxu0 0.0
    %496 = vmatprep.subr.mxu0 0.0
    %497 = vmatpush2.msra.mxu0 0.0
    %498 = vmatprep.subr.mxu0 0.0
    %499 = vmatpush2.msra.mxu0 0.0
    %500 = vmatprep.subr.mxu0 0.0
    %501 = vmatpush2.msra.mxu0 0.0
    %502 = vmatprep.subr.mxu0 0.0
    %503 = vmatpush2.msra.mxu0 0.0
    %504 = vmatprep.subr.mxu0 0.0
    %505 = vmatpush2.msra.mxu0 0.0
    %506 = vmatprep.subr.mxu0 0.0
    %507 = vmatpush2.msra.mxu0 0.0
    %508 = vmatprep.subr.mxu0 0.0
    %509 = vmatpush2.msra.mxu0 0.0
    %510 = vmatprep.subr.mxu0 0.0
    %511 = vmatpush2.msra.mxu0 0.0
    %512 = vmatprep.subr.mxu0 0.0
    %513 = vmatpush2.msra.mxu0 0.0
    %514 = vmatprep.subr.mxu0 0.0
    %515 = vmatpush2.msra.mxu0 0.0
    %516 = vmatprep.subr.mxu0 0.0
    %517 = vmatpush2.msra.mxu0 0.0
    %518 = vmatprep.subr.mxu0 0.0
    %519 = vmatpush2.msra.mxu0 0.0
    %520 = vmatprep.subr.mxu0 0.0
    %521 = vmatpush2.msra.mxu0 0.0
    %522 = vmatprep.mubr.f32.mxu0 0.0
    %523 = vmatmul.mubr.f32.gmra.mxu0 %v456
    %v524 = vpop.f32.mrf.mxu0
    %v525 = vadd.f32 0.0, %v524
    %v526 = vpop.f32.mrf.mxu0
    %527 = vdwg.mxu0
    %v529 = vrot.slane %v525, 5
    %v531 = vadd.f32 %v134, %v529
    %v532 = vmul.f32 %v531, %v147
    %v533 = vtanh.pop %v532
    %v534 = vmul.f32 %v533, %v147
    %v535 = vadd.f32 %v534, %v148
    %v537 = vrot.slane %v445, 7
    %v539 = vmul.f32 %v535, %v537
    %541 = vrot.lane.b32.xlu0 %v535, 64
    %v542 = vpop.permute.xlu0 %541
    %v544 = vmul.f32 %v535, %v542
    %546 = vrot.lane.b32.xlu0 %v544, 32
    %v547 = vpop.permute.xlu0 %546
    %v549 = vadd.f32 %v539, %v547
    %v550 = vtanh.pop %v549
    %552 = vrot.lane.b32.xlu0 %v550, 64
    %v553 = vpop.permute.xlu0 %552
    %v555 = vmul.f32 %v535, %v553
    %v557 = vrot.slane %v555, 3
    %558 = vrot.lane.b32.xlu0 %v557, 32
    %v559 = vpop.permute.xlu0 %558
    %v560 = vsel %vm149, %v559, 0
    %562 = vmatprep.subr.mxu0 0.0
    %563 = vmatpush1.msra.mxu0 0.0
    %564 = vmatprep.subr.mxu0 0.0
    %565 = vmatpush1.msra.mxu0 0.0
    %566 = vmatprep.subr.mxu0 0.0
    %567 = vmatpush1.msra.mxu0 0.0
    %568 = vmatprep.subr.mxu0 0.0
    %569 = vmatpush1.msra.mxu0 0.0
    %570 = vmatprep.subr.mxu0 0.0
    %571 = vmatpush1.msra.mxu0 0.0
    %572 = vmatprep.subr.mxu0 0.0
    %573 = vmatpush1.msra.mxu0 0.0
    %574 = vmatprep.subr.mxu0 0.0
    %575 = vmatpush1.msra.mxu0 0.0
    %576 = vmatprep.subr.mxu0 0.0
    %577 = vmatpush1.msra.mxu0 0.0
    %578 = vmatprep.subr.mxu0 0.0
    %579 = vmatpush1.msra.mxu0 0.0
    %580 = vmatprep.subr.mxu0 0.0
    %581 = vmatpush1.msra.mxu0 0.0
    %582 = vmatprep.subr.mxu0 0.0
    %583 = vmatpush1.msra.mxu0 0.0
    %584 = vmatprep.subr.mxu0 0.0
    %585 = vmatpush1.msra.mxu0 0.0
    %586 = vmatprep.subr.mxu0 0.0
    %587 = vmatpush1.msra.mxu0 %v45
    %588 = vmatprep.subr.mxu0 0.0
    %589 = vmatpush1.msra.mxu0 %v44
    %590 = vmatprep.subr.mxu0 0.0
    %591 = vmatpush1.msra.mxu0 %v43
    %592 = vmatprep.subr.mxu0 0.0
    %593 = vmatpush1.msra.mxu0 %v42
    %594 = vmatprep.subr.mxu0 0.0
    %595 = vmatpush2.msra.mxu0 0.0
    %596 = vmatprep.subr.mxu0 0.0
    %597 = vmatpush2.msra.mxu0 0.0
    %598 = vmatprep.subr.mxu0 0.0
    %599 = vmatpush2.msra.mxu0 0.0
    %600 = vmatprep.subr.mxu0 0.0
    %601 = vmatpush2.msra.mxu0 0.0
    %602 = vmatprep.subr.mxu0 0.0
    %603 = vmatpush2.msra.mxu0 0.0
    %604 = vmatprep.subr.mxu0 0.0
    %605 = vmatpush2.msra.mxu0 0.0
    %606 = vmatprep.subr.mxu0 0.0
    %607 = vmatpush2.msra.mxu0 0.0
    %608 = vmatprep.subr.mxu0 0.0
    %609 = vmatpush2.msra.mxu0 0.0
    %610 = vmatprep.subr.mxu0 0.0
    %611 = vmatpush2.msra.mxu0 0.0
    %612 = vmatprep.subr.mxu0 0.0
    %613 = vmatpush2.msra.mxu0 0.0
    %614 = vmatprep.subr.mxu0 0.0
    %615 = vmatpush2.msra.mxu0 0.0
    %616 = vmatprep.subr.mxu0 0.0
    %617 = vmatpush2.msra.mxu0 0.0
    %618 = vmatprep.subr.mxu0 0.0
    %619 = vmatpush2.msra.mxu0 0.0
    %620 = vmatprep.subr.mxu0 0.0
    %621 = vmatpush2.msra.mxu0 0.0
    %622 = vmatprep.subr.mxu0 0.0
    %623 = vmatpush2.msra.mxu0 0.0
    %624 = vmatprep.subr.mxu0 0.0
    %625 = vmatpush2.msra.mxu0 0.0
    %626 = vmatprep.mubr.f32.mxu0 0.0
    %627 = vmatmul.mubr.f32.gmra.mxu0 %v560
    %v628 = vpop.f32.mrf.mxu0
    %v629 = vadd.f32 0.0, %v628
    %v630 = vpop.f32.mrf.mxu0
    %631 = vdwg.mxu0
    %v633 = vrot.slane %v629, 4
    %v635 = vadd.f32 %v134, %v633
    %v636 = vmul.f32 %v635, %v147
    %v637 = vtanh.pop %v636
    %v638 = vmul.f32 %v637, %v147
    %v639 = vadd.f32 %v638, %v148
    %v641 = vrot.slane %v549, 7
    %v643 = vmul.f32 %v639, %v641
    %645 = vrot.lane.b32.xlu0 %v639, 64
    %v646 = vpop.permute.xlu0 %645
    %v648 = vmul.f32 %v639, %v646
    %650 = vrot.lane.b32.xlu0 %v648, 32
    %v651 = vpop.permute.xlu0 %650
    %v653 = vadd.f32 %v643, %v651
    %v654 = vtanh.pop %v653
    %656 = vrot.lane.b32.xlu0 %v654, 64
    %v657 = vpop.permute.xlu0 %656
    %v659 = vmul.f32 %v639, %v657
    %v661 = vrot.slane %v659, 4
    %662 = vrot.lane.b32.xlu0 %v661, 32
    %v663 = vpop.permute.xlu0 %662
    %v664 = vsel %vm149, %v663, 0
    %666 = vmatprep.subr.mxu0 0.0
    %667 = vmatpush1.msra.mxu0 0.0
    %668 = vmatprep.subr.mxu0 0.0
    %669 = vmatpush1.msra.mxu0 0.0
    %670 = vmatprep.subr.mxu0 0.0
    %671 = vmatpush1.msra.mxu0 0.0
    %672 = vmatprep.subr.mxu0 0.0
    %673 = vmatpush1.msra.mxu0 0.0
    %674 = vmatprep.subr.mxu0 0.0
    %675 = vmatpush1.msra.mxu0 0.0
    %676 = vmatprep.subr.mxu0 0.0
    %677 = vmatpush1.msra.mxu0 0.0
    %678 = vmatprep.subr.mxu0 0.0
    %679 = vmatpush1.msra.mxu0 0.0
    %680 = vmatprep.subr.mxu0 0.0
    %681 = vmatpush1.msra.mxu0 0.0
    %682 = vmatprep.subr.mxu0 0.0
    %683 = vmatpush1.msra.mxu0 0.0
    %684 = vmatprep.subr.mxu0 0.0
    %685 = vmatpush1.msra.mxu0 0.0
    %686 = vmatprep.subr.mxu0 0.0
    %687 = vmatpush1.msra.mxu0 0.0
    %688 = vmatprep.subr.mxu0 0.0
    %689 = vmatpush1.msra.mxu0 0.0
    %690 = vmatprep.subr.mxu0 0.0
    %691 = vmatpush1.msra.mxu0 %v45
    %692 = vmatprep.subr.mxu0 0.0
    %693 = vmatpush1.msra.mxu0 %v44
    %694 = vmatprep.subr.mxu0 0.0
    %695 = vmatpush1.msra.mxu0 %v43
    %696 = vmatprep.subr.mxu0 0.0
    %697 = vmatpush1.msra.mxu0 %v42
    %698 = vmatprep.subr.mxu0 0.0
    %699 = vmatpush2.msra.mxu0 0.0
    %700 = vmatprep.subr.mxu0 0.0
    %701 = vmatpush2.msra.mxu0 0.0
    %702 = vmatprep.subr.mxu0 0.0
    %703 = vmatpush2.msra.mxu0 0.0
    %704 = vmatprep.subr.mxu0 0.0
    %705 = vmatpush2.msra.mxu0 0.0
    %706 = vmatprep.subr.mxu0 0.0
    %707 = vmatpush2.msra.mxu0 0.0
    %708 = vmatprep.subr.mxu0 0.0
    %709 = vmatpush2.msra.mxu0 0.0
    %710 = vmatprep.subr.mxu0 0.0
    %711 = vmatpush2.msra.mxu0 0.0
    %712 = vmatprep.subr.mxu0 0.0
    %713 = vmatpush2.msra.mxu0 0.0
    %714 = vmatprep.subr.mxu0 0.0
    %715 = vmatpush2.msra.mxu0 0.0
    %716 = vmatprep.subr.mxu0 0.0
    %717 = vmatpush2.msra.mxu0 0.0
    %718 = vmatprep.subr.mxu0 0.0
    %719 = vmatpush2.msra.mxu0 0.0
    %720 = vmatprep.subr.mxu0 0.0
    %721 = vmatpush2.msra.mxu0 0.0
    %722 = vmatprep.subr.mxu0 0.0
    %723 = vmatpush2.msra.mxu0 0.0
    %724 = vmatprep.subr.mxu0 0.0
    %725 = vmatpush2.msra.mxu0 0.0
    %726 = vmatprep.subr.mxu0 0.0
    %727 = vmatpush2.msra.mxu0 0.0
    %728 = vmatprep.subr.mxu0 0.0
    %729 = vmatpush2.msra.mxu0 0.0
    %730 = vmatprep.mubr.f32.mxu0 0.0
    %731 = vmatmul.mubr.f32.gmra.mxu0 %v664
    %v732 = vpop.f32.mrf.mxu0
    %v733 = vadd.f32 0.0, %v732
    %v734 = vpop.f32.mrf.mxu0
    %735 = vdwg.mxu0
    %v737 = vrot.slane %v733, 3
    %v739 = vadd.f32 %v134, %v737
    %v740 = vmul.f32 %v739, %v147
    %v741 = vtanh.pop %v740
    %v742 = vmul.f32 %v741, %v147
    %v743 = vadd.f32 %v742, %v148
    %v745 = vrot.slane %v653, 7
    %v747 = vmul.f32 %v743, %v745
    %749 = vrot.lane.b32.xlu0 %v743, 64
    %v750 = vpop.permute.xlu0 %749
    %v752 = vmul.f32 %v743, %v750
    %754 = vrot.lane.b32.xlu0 %v752, 32
    %v755 = vpop.permute.xlu0 %754
    %v757 = vadd.f32 %v747, %v755
    %v758 = vtanh.pop %v757
    %760 = vrot.lane.b32.xlu0 %v758, 64
    %v761 = vpop.permute.xlu0 %760
    %v763 = vmul.f32 %v743, %v761
    %v765 = vrot.slane %v763, 5
    %766 = vrot.lane.b32.xlu0 %v765, 32
    %v767 = vpop.permute.xlu0 %766
    %v768 = vsel %vm149, %v767, 0
    %770 = vmatprep.subr.mxu0 0.0
    %771 = vmatpush1.msra.mxu0 0.0
    %772 = vmatprep.subr.mxu0 0.0
    %773 = vmatpush1.msra.mxu0 0.0
    %774 = vmatprep.subr.mxu0 0.0
    %775 = vmatpush1.msra.mxu0 0.0
    %776 = vmatprep.subr.mxu0 0.0
    %777 = vmatpush1.msra.mxu0 0.0
    %778 = vmatprep.subr.mxu0 0.0
    %779 = vmatpush1.msra.mxu0 0.0
    %780 = vmatprep.subr.mxu0 0.0
    %781 = vmatpush1.msra.mxu0 0.0
    %782 = vmatprep.subr.mxu0 0.0
    %783 = vmatpush1.msra.mxu0 0.0
    %784 = vmatprep.subr.mxu0 0.0
    %785 = vmatpush1.msra.mxu0 0.0
    %786 = vmatprep.subr.mxu0 0.0
    %787 = vmatpush1.msra.mxu0 0.0
    %788 = vmatprep.subr.mxu0 0.0
    %789 = vmatpush1.msra.mxu0 0.0
    %790 = vmatprep.subr.mxu0 0.0
    %791 = vmatpush1.msra.mxu0 0.0
    %792 = vmatprep.subr.mxu0 0.0
    %793 = vmatpush1.msra.mxu0 0.0
    %794 = vmatprep.subr.mxu0 0.0
    %795 = vmatpush1.msra.mxu0 %v45
    %796 = vmatprep.subr.mxu0 0.0
    %797 = vmatpush1.msra.mxu0 %v44
    %798 = vmatprep.subr.mxu0 0.0
    %799 = vmatpush1.msra.mxu0 %v43
    %800 = vmatprep.subr.mxu0 0.0
    %801 = vmatpush1.msra.mxu0 %v42
    %802 = vmatprep.subr.mxu0 0.0
    %803 = vmatpush2.msra.mxu0 0.0
    %804 = vmatprep.subr.mxu0 0.0
    %805 = vmatpush2.msra.mxu0 0.0
    %806 = vmatprep.subr.mxu0 0.0
    %807 = vmatpush2.msra.mxu0 0.0
    %808 = vmatprep.subr.mxu0 0.0
    %809 = vmatpush2.msra.mxu0 0.0
    %810 = vmatprep.subr.mxu0 0.0
    %811 = vmatpush2.msra.mxu0 0.0
    %812 = vmatprep.subr.mxu0 0.0
    %813 = vmatpush2.msra.mxu0 0.0
    %814 = vmatprep.subr.mxu0 0.0
    %815 = vmatpush2.msra.mxu0 0.0
    %816 = vmatprep.subr.mxu0 0.0
    %817 = vmatpush2.msra.mxu0 0.0
    %818 = vmatprep.subr.mxu0 0.0
    %819 = vmatpush2.msra.mxu0 0.0
    %820 = vmatprep.subr.mxu0 0.0
    %821 = vmatpush2.msra.mxu0 0.0
    %822 = vmatprep.subr.mxu0 0.0
    %823 = vmatpush2.msra.mxu0 0.0
    %824 = vmatprep.subr.mxu0 0.0
    %825 = vmatpush2.msra.mxu0 0.0
    %826 = vmatprep.subr.mxu0 0.0
    %827 = vmatpush2.msra.mxu0 0.0
    %828 = vmatprep.subr.mxu0 0.0
    %829 = vmatpush2.msra.mxu0 0.0
    %830 = vmatprep.subr.mxu0 0.0
    %831 = vmatpush2.msra.mxu0 0.0
    %832 = vmatprep.subr.mxu0 0.0
    %833 = vmatpush2.msra.mxu0 0.0
    %834 = vmatprep.mubr.f32.mxu0 0.0
    %835 = vmatmul.mubr.f32.gmra.mxu0 %v768
    %v836 = vpop.f32.mrf.mxu0
    %v837 = vadd.f32 0.0, %v836
    %v838 = vpop.f32.mrf.mxu0
    %839 = vdwg.mxu0
    %v841 = vrot.slane %v837, 2
    %v843 = vadd.f32 %v134, %v841
    %v844 = vmul.f32 %v843, %v147
    %v845 = vtanh.pop %v844
    %v846 = vmul.f32 %v845, %v147
    %v847 = vadd.f32 %v846, %v148
    %v849 = vrot.slane %v757, 7
    %v851 = vmul.f32 %v847, %v849
    %853 = vrot.lane.b32.xlu0 %v847, 64
    %v854 = vpop.permute.xlu0 %853
    %v856 = vmul.f32 %v847, %v854
    %858 = vrot.lane.b32.xlu0 %v856, 32
    %v859 = vpop.permute.xlu0 %858
    %v861 = vadd.f32 %v851, %v859
    %v862 = vtanh.pop %v861
    %864 = vrot.lane.b32.xlu0 %v862, 64
    %v865 = vpop.permute.xlu0 %864
    %v867 = vmul.f32 %v847, %v865
    %v869 = vrot.slane %v867, 6
    %870 = vrot.lane.b32.xlu0 %v869, 32
    %v871 = vpop.permute.xlu0 %870
    %v872 = vsel %vm149, %v871, 0
    %874 = vmatprep.subr.mxu0 0.0
    %875 = vmatpush1.msra.mxu0 0.0
    %876 = vmatprep.subr.mxu0 0.0
    %877 = vmatpush1.msra.mxu0 0.0
    %878 = vmatprep.subr.mxu0 0.0
    %879 = vmatpush1.msra.mxu0 0.0
    %880 = vmatprep.subr.mxu0 0.0
    %881 = vmatpush1.msra.mxu0 0.0
    %882 = vmatprep.subr.mxu0 0.0
    %883 = vmatpush1.msra.mxu0 0.0
    %884 = vmatprep.subr.mxu0 0.0
    %885 = vmatpush1.msra.mxu0 0.0
    %886 = vmatprep.subr.mxu0 0.0
    %887 = vmatpush1.msra.mxu0 0.0
    %888 = vmatprep.subr.mxu0 0.0
    %889 = vmatpush1.msra.mxu0 0.0
    %890 = vmatprep.subr.mxu0 0.0
    %891 = vmatpush1.msra.mxu0 0.0
    %892 = vmatprep.subr.mxu0 0.0
    %893 = vmatpush1.msra.mxu0 0.0
    %894 = vmatprep.subr.mxu0 0.0
    %895 = vmatpush1.msra.mxu0 0.0
    %896 = vmatprep.subr.mxu0 0.0
    %897 = vmatpush1.msra.mxu0 0.0
    %898 = vmatprep.subr.mxu0 0.0
    %899 = vmatpush1.msra.mxu0 %v45
    %900 = vmatprep.subr.mxu0 0.0
    %901 = vmatpush1.msra.mxu0 %v44
    %902 = vmatprep.subr.mxu0 0.0
    %903 = vmatpush1.msra.mxu0 %v43
    %904 = vmatprep.subr.mxu0 0.0
    %905 = vmatpush1.msra.mxu0 %v42
    %906 = vmatprep.subr.mxu0 0.0
    %907 = vmatpush2.msra.mxu0 0.0
    %908 = vmatprep.subr.mxu0 0.0
    %909 = vmatpush2.msra.mxu0 0.0
    %910 = vmatprep.subr.mxu0 0.0
    %911 = vmatpush2.msra.mxu0 0.0
    %912 = vmatprep.subr.mxu0 0.0
    %913 = vmatpush2.msra.mxu0 0.0
    %914 = vmatprep.subr.mxu0 0.0
    %915 = vmatpush2.msra.mxu0 0.0
    %916 = vmatprep.subr.mxu0 0.0
    %917 = vmatpush2.msra.mxu0 0.0
    %918 = vmatprep.subr.mxu0 0.0
    %919 = vmatpush2.msra.mxu0 0.0
    %920 = vmatprep.subr.mxu0 0.0
    %921 = vmatpush2.msra.mxu0 0.0
    %922 = vmatprep.subr.mxu0 0.0
    %923 = vmatpush2.msra.mxu0 0.0
    %924 = vmatprep.subr.mxu0 0.0
    %925 = vmatpush2.msra.mxu0 0.0
    %926 = vmatprep.subr.mxu0 0.0
    %927 = vmatpush2.msra.mxu0 0.0
    %928 = vmatprep.subr.mxu0 0.0
    %929 = vmatpush2.msra.mxu0 0.0
    %930 = vmatprep.subr.mxu0 0.0
    %931 = vmatpush2.msra.mxu0 0.0
    %932 = vmatprep.subr.mxu0 0.0
    %933 = vmatpush2.msra.mxu0 0.0
    %934 = vmatprep.subr.mxu0 0.0
    %935 = vmatpush2.msra.mxu0 0.0
    %936 = vmatprep.subr.mxu0 0.0
    %937 = vmatpush2.msra.mxu0 0.0
    %938 = vmatprep.mubr.f32.mxu0 0.0
    %939 = vmatmul.mubr.f32.gmra.mxu0 %v872
    %v940 = vpop.f32.mrf.mxu0
    %v941 = vadd.f32 0.0, %v940
    %v942 = vpop.f32.mrf.mxu0
    %943 = vdwg.mxu0
    %v945 = vrot.slane %v941, 1
    %v947 = vadd.f32 %v134, %v945
    %v948 = vmul.f32 %v947, %v147
    %v949 = vtanh.pop %v948
    %v950 = vmul.f32 %v949, %v147
    %v951 = vadd.f32 %v950, %v148
    %v953 = vrot.slane %v861, 7
    %v955 = vmul.f32 %v951, %v953
    %957 = vrot.lane.b32.xlu0 %v951, 64
    %v958 = vpop.permute.xlu0 %957
    %v960 = vmul.f32 %v951, %v958
    %962 = vrot.lane.b32.xlu0 %v960, 32
    %v963 = vpop.permute.xlu0 %962
    %v965 = vadd.f32 %v955, %v963
    %v966 = vtanh.pop %v965
    %968 = vrot.lane.b32.xlu0 %v966, 64
    %v969 = vpop.permute.xlu0 %968
    %v971 = vmul.f32 %v951, %v969
    %v973 = vrot.slane %v971, 7
    %974 = vrot.lane.b32.xlu0 %v973, 32
    %v975 = vpop.permute.xlu0 %974
    %v976 = vsel %vm149, %v975, 0
    %978 = vmatprep.subr.mxu0 0.0
    %979 = vmatpush1.msra.mxu0 0.0
    %980 = vmatprep.subr.mxu0 0.0
    %981 = vmatpush1.msra.mxu0 0.0
    %982 = vmatprep.subr.mxu0 0.0
    %983 = vmatpush1.msra.mxu0 0.0
    %984 = vmatprep.subr.mxu0 0.0
    %985 = vmatpush1.msra.mxu0 0.0
    %986 = vmatprep.subr.mxu0 0.0
    %987 = vmatpush1.msra.mxu0 0.0
    %988 = vmatprep.subr.mxu0 0.0
    %989 = vmatpush1.msra.mxu0 0.0
    %990 = vmatprep.subr.mxu0 0.0
    %991 = vmatpush1.msra.mxu0 0.0
    %992 = vmatprep.subr.mxu0 0.0
    %993 = vmatpush1.msra.mxu0 0.0
    %994 = vmatprep.subr.mxu0 0.0
    %995 = vmatpush1.msra.mxu0 0.0
    %996 = vmatprep.subr.mxu0 0.0
    %997 = vmatpush1.msra.mxu0 0.0
    %998 = vmatprep.subr.mxu0 0.0
    %999 = vmatpush1.msra.mxu0 0.0
    %1000 = vmatprep.subr.mxu0 0.0
    %1001 = vmatpush1.msra.mxu0 0.0
    %1002 = vmatprep.subr.mxu0 0.0
    %1003 = vmatpush1.msra.mxu0 %v45
    %1004 = vmatprep.subr.mxu0 0.0
    %1005 = vmatpush1.msra.mxu0 %v44
    %1006 = vmatprep.subr.mxu0 0.0
    %1007 = vmatpush1.msra.mxu0 %v43
    %1008 = vmatprep.subr.mxu0 0.0
    %1009 = vmatpush1.msra.mxu0 %v42
    %1010 = vmatprep.subr.mxu0 0.0
    %1011 = vmatpush2.msra.mxu0 0.0
    %1012 = vmatprep.subr.mxu0 0.0
    %1013 = vmatpush2.msra.mxu0 0.0
    %1014 = vmatprep.subr.mxu0 0.0
    %1015 = vmatpush2.msra.mxu0 0.0
    %1016 = vmatprep.subr.mxu0 0.0
    %1017 = vmatpush2.msra.mxu0 0.0
    %1018 = vmatprep.subr.mxu0 0.0
    %1019 = vmatpush2.msra.mxu0 0.0
    %1020 = vmatprep.subr.mxu0 0.0
    %1021 = vmatpush2.msra.mxu0 0.0
    %1022 = vmatprep.subr.mxu0 0.0
    %1023 = vmatpush2.msra.mxu0 0.0
    %1024 = vmatprep.subr.mxu0 0.0
    %1025 = vmatpush2.msra.mxu0 0.0
    %1026 = vmatprep.subr.mxu0 0.0
    %1027 = vmatpush2.msra.mxu0 0.0
    %1028 = vmatprep.subr.mxu0 0.0
    %1029 = vmatpush2.msra.mxu0 0.0
    %1030 = vmatprep.subr.mxu0 0.0
    %1031 = vmatpush2.msra.mxu0 0.0
    %1032 = vmatprep.subr.mxu0 0.0
    %1033 = vmatpush2.msra.mxu0 0.0
    %1034 = vmatprep.subr.mxu0 0.0
    %1035 = vmatpush2.msra.mxu0 0.0
    %1036 = vmatprep.subr.mxu0 0.0
    %1037 = vmatpush2.msra.mxu0 0.0
    %1038 = vmatprep.subr.mxu0 0.0
    %1039 = vmatpush2.msra.mxu0 0.0
    %1040 = vmatprep.subr.mxu0 0.0
    %1041 = vmatpush2.msra.mxu0 0.0
    %1042 = vmatprep.mubr.f32.mxu0 0.0
    %1043 = vmatmul.mubr.f32.gmra.mxu0 %v976
    %v1044 = vpop.f32.mrf.mxu0
    %v1045 = vadd.f32 0.0, %v1044
    %v1046 = vpop.f32.mrf.mxu0
    %1047 = vdwg.mxu0
    %v1048 = vadd.f32 %v139, %v1045
    %v1049 = vmul.f32 %v1048, %v147
    %v1050 = vtanh.pop %v1049
    %v1051 = vmul.f32 %v1050, %v147
    %v1052 = vadd.f32 %v1051, %v148
    %v1054 = vrot.slane %v965, 7
    %v1056 = vmul.f32 %v1052, %v1054
    %1058 = vrot.lane.b32.xlu0 %v1052, 64
    %v1059 = vpop.permute.xlu0 %1058
    %v1061 = vmul.f32 %v1052, %v1059
    %1063 = vrot.lane.b32.xlu0 %v1061, 32
    %v1064 = vpop.permute.xlu0 %1063
    %v1066 = vadd.f32 %v1056, %v1064
    %v1067 = vtanh.pop %v1066
    %1069 = vrot.lane.b32.xlu0 %v1067, 64
    %v1070 = vpop.permute.xlu0 %1069
    %v1072 = vmul.f32 %v1052, %v1070
    %1074 = vrot.lane.b32.xlu0 %v1072, 32
    %v1075 = vpop.permute.xlu0 %1074
    %v1076 = vsel %vm149, %v1075, 0
    %1078 = vmatprep.subr.mxu0 0.0
    %1079 = vmatpush1.msra.mxu0 0.0
    %1080 = vmatprep.subr.mxu0 0.0
    %1081 = vmatpush1.msra.mxu0 0.0
    %1082 = vmatprep.subr.mxu0 0.0
    %1083 = vmatpush1.msra.mxu0 0.0
    %1084 = vmatprep.subr.mxu0 0.0
    %1085 = vmatpush1.msra.mxu0 0.0
    %1086 = vmatprep.subr.mxu0 0.0
    %1087 = vmatpush1.msra.mxu0 0.0
    %1088 = vmatprep.subr.mxu0 0.0
    %1089 = vmatpush1.msra.mxu0 0.0
    %1090 = vmatprep.subr.mxu0 0.0
    %1091 = vmatpush1.msra.mxu0 0.0
    %1092 = vmatprep.subr.mxu0 0.0
    %1093 = vmatpush1.msra.mxu0 0.0
    %1094 = vmatprep.subr.mxu0 0.0
    %1095 = vmatpush1.msra.mxu0 0.0
    %1096 = vmatprep.subr.mxu0 0.0
    %1097 = vmatpush1.msra.mxu0 0.0
    %1098 = vmatprep.subr.mxu0 0.0
    %1099 = vmatpush1.msra.mxu0 0.0
    %1100 = vmatprep.subr.mxu0 0.0
    %1101 = vmatpush1.msra.mxu0 0.0
    %1102 = vmatprep.subr.mxu0 0.0
    %1103 = vmatpush1.msra.mxu0 %v45
    %1104 = vmatprep.subr.mxu0 0.0
    %1105 = vmatpush1.msra.mxu0 %v44
    %1106 = vmatprep.subr.mxu0 0.0
    %1107 = vmatpush1.msra.mxu0 %v43
    %1108 = vmatprep.subr.mxu0 0.0
    %1109 = vmatpush1.msra.mxu0 %v42
    %1110 = vmatprep.subr.mxu0 0.0
    %1111 = vmatpush2.msra.mxu0 0.0
    %1112 = vmatprep.subr.mxu0 0.0
    %1113 = vmatpush2.msra.mxu0 0.0
    %1114 = vmatprep.subr.mxu0 0.0
    %1115 = vmatpush2.msra.mxu0 0.0
    %1116 = vmatprep.subr.mxu0 0.0
    %1117 = vmatpush2.msra.mxu0 0.0
    %1118 = vmatprep.subr.mxu0 0.0
    %1119 = vmatpush2.msra.mxu0 0.0
    %1120 = vmatprep.subr.mxu0 0.0
    %1121 = vmatpush2.msra.mxu0 0.0
    %1122 = vmatprep.subr.mxu0 0.0
    %1123 = vmatpush2.msra.mxu0 0.0
    %1124 = vmatprep.subr.mxu0 0.0
    %1125 = vmatpush2.msra.mxu0 0.0
    %1126 = vmatprep.subr.mxu0 0.0
    %1127 = vmatpush2.msra.mxu0 0.0
    %1128 = vmatprep.subr.mxu0 0.0
    %1129 = vmatpush2.msra.mxu0 0.0
    %1130 = vmatprep.subr.mxu0 0.0
    %1131 = vmatpush2.msra.mxu0 0.0
    %1132 = vmatprep.subr.mxu0 0.0
    %1133 = vmatpush2.msra.mxu0 0.0
    %1134 = vmatprep.subr.mxu0 0.0
    %1135 = vmatpush2.msra.mxu0 0.0
    %1136 = vmatprep.subr.mxu0 0.0
    %1137 = vmatpush2.msra.mxu0 0.0
    %1138 = vmatprep.subr.mxu0 0.0
    %1139 = vmatpush2.msra.mxu0 0.0
    %1140 = vmatprep.subr.mxu0 0.0
    %1141 = vmatpush2.msra.mxu0 0.0
    %1142 = vmatprep.mubr.f32.mxu0 0.0
    %1143 = vmatmul.mubr.f32.gmra.mxu0 %v1076
    %v1144 = vpop.f32.mrf.mxu0
    %v1145 = vadd.f32 0.0, %v1144
    %v1146 = vpop.f32.mrf.mxu0
    %1147 = vdwg.mxu0
    %v1149 = vrot.slane %v1145, 7
    %v1151 = vadd.f32 %v139, %v1149
    %v1152 = vmul.f32 %v1151, %v147
    %v1153 = vtanh.pop %v1152
    %v1154 = vmul.f32 %v1153, %v147
    %v1155 = vadd.f32 %v1154, %v148
    %v1157 = vrot.slane %v1066, 7
    %v1159 = vmul.f32 %v1155, %v1157
    %1161 = vrot.lane.b32.xlu0 %v1155, 64
    %v1162 = vpop.permute.xlu0 %1161
    %v1164 = vmul.f32 %v1155, %v1162
    %1166 = vrot.lane.b32.xlu0 %v1164, 32
    %v1167 = vpop.permute.xlu0 %1166
    %v1169 = vadd.f32 %v1159, %v1167
    %v1170 = vtanh.pop %v1169
    %1172 = vrot.lane.b32.xlu0 %v1170, 64
    %v1173 = vpop.permute.xlu0 %1172
    %v1175 = vmul.f32 %v1155, %v1173
    %v1177 = vrot.slane %v1175, 1
    %1178 = vrot.lane.b32.xlu0 %v1177, 32
    %v1179 = vpop.permute.xlu0 %1178
    %v1180 = vsel %vm149, %v1179, 0
    %1182 = vmatprep.subr.mxu0 0.0
    %1183 = vmatpush1.msra.mxu0 0.0
    %1184 = vmatprep.subr.mxu0 0.0
    %1185 = vmatpush1.msra.mxu0 0.0
    %1186 = vmatprep.subr.mxu0 0.0
    %1187 = vmatpush1.msra.mxu0 0.0
    %1188 = vmatprep.subr.mxu0 0.0
    %1189 = vmatpush1.msra.mxu0 0.0
    %1190 = vmatprep.subr.mxu0 0.0
    %1191 = vmatpush1.msra.mxu0 0.0
    %1192 = vmatprep.subr.mxu0 0.0
    %1193 = vmatpush1.msra.mxu0 0.0
    %1194 = vmatprep.subr.mxu0 0.0
    %1195 = vmatpush1.msra.mxu0 0.0
    %1196 = vmatprep.subr.mxu0 0.0
    %1197 = vmatpush1.msra.mxu0 0.0
    %1198 = vmatprep.subr.mxu0 0.0
    %1199 = vmatpush1.msra.mxu0 0.0
    %1200 = vmatprep.subr.mxu0 0.0
    %1201 = vmatpush1.msra.mxu0 0.0
    %1202 = vmatprep.subr.mxu0 0.0
    %1203 = vmatpush1.msra.mxu0 0.0
    %1204 = vmatprep.subr.mxu0 0.0
    %1205 = vmatpush1.msra.mxu0 0.0
    %1206 = vmatprep.subr.mxu0 0.0
    %1207 = vmatpush1.msra.mxu0 %v45
    %1208 = vmatprep.subr.mxu0 0.0
    %1209 = vmatpush1.msra.mxu0 %v44
    %1210 = vmatprep.subr.mxu0 0.0
    %1211 = vmatpush1.msra.mxu0 %v43
    %1212 = vmatprep.subr.mxu0 0.0
    %1213 = vmatpush1.msra.mxu0 %v42
    %1214 = vmatprep.subr.mxu0 0.0
    %1215 = vmatpush2.msra.mxu0 0.0
    %1216 = vmatprep.subr.mxu0 0.0
    %1217 = vmatpush2.msra.mxu0 0.0
    %1218 = vmatprep.subr.mxu0 0.0
    %1219 = vmatpush2.msra.mxu0 0.0
    %1220 = vmatprep.subr.mxu0 0.0
    %1221 = vmatpush2.msra.mxu0 0.0
    %1222 = vmatprep.subr.mxu0 0.0
    %1223 = vmatpush2.msra.mxu0 0.0
    %1224 = vmatprep.subr.mxu0 0.0
    %1225 = vmatpush2.msra.mxu0 0.0
    %1226 = vmatprep.subr.mxu0 0.0
    %1227 = vmatpush2.msra.mxu0 0.0
    %1228 = vmatprep.subr.mxu0 0.0
    %1229 = vmatpush2.msra.mxu0 0.0
    %1230 = vmatprep.subr.mxu0 0.0
    %1231 = vmatpush2.msra.mxu0 0.0
    %1232 = vmatprep.subr.mxu0 0.0
    %1233 = vmatpush2.msra.mxu0 0.0
    %1234 = vmatprep.subr.mxu0 0.0
    %1235 = vmatpush2.msra.mxu0 0.0
    %1236 = vmatprep.subr.mxu0 0.0
    %1237 = vmatpush2.msra.mxu0 0.0
    %1238 = vmatprep.subr.mxu0 0.0
    %1239 = vmatpush2.msra.mxu0 0.0
    %1240 = vmatprep.subr.mxu0 0.0
    %1241 = vmatpush2.msra.mxu0 0.0
    %1242 = vmatprep.subr.mxu0 0.0
    %1243 = vmatpush2.msra.mxu0 0.0
    %1244 = vmatprep.subr.mxu0 0.0
    %1245 = vmatpush2.msra.mxu0 0.0
    %1246 = vmatprep.mubr.f32.mxu0 0.0
    %1247 = vmatmul.mubr.f32.gmra.mxu0 %v1180
    %v1248 = vpop.f32.mrf.mxu0
    %v1249 = vadd.f32 0.0, %v1248
    %v1250 = vpop.f32.mrf.mxu0
    %1251 = vdwg.mxu0
    %v1253 = vrot.slane %v1249, 6
    %v1255 = vadd.f32 %v139, %v1253
    %v1256 = vmul.f32 %v1255, %v147
    %v1257 = vtanh.pop %v1256
    %v1258 = vmul.f32 %v1257, %v147
    %v1259 = vadd.f32 %v1258, %v148
    %v1261 = vrot.slane %v1169, 7
    %v1263 = vmul.f32 %v1259, %v1261
    %1265 = vrot.lane.b32.xlu0 %v1259, 64
    %v1266 = vpop.permute.xlu0 %1265
    %v1268 = vmul.f32 %v1259, %v1266
    %1270 = vrot.lane.b32.xlu0 %v1268, 32
    %v1271 = vpop.permute.xlu0 %1270
    %v1273 = vadd.f32 %v1263, %v1271
    %v1274 = vtanh.pop %v1273
    %1276 = vrot.lane.b32.xlu0 %v1274, 64
    %v1277 = vpop.permute.xlu0 %1276
    %v1279 = vmul.f32 %v1259, %v1277
    %v1281 = vrot.slane %v1279, 2
    %1282 = vrot.lane.b32.xlu0 %v1281, 32
    %v1283 = vpop.permute.xlu0 %1282
    %v1284 = vsel %vm149, %v1283, 0
    %1286 = vmatprep.subr.mxu0 0.0
    %1287 = vmatpush1.msra.mxu0 0.0
    %1288 = vmatprep.subr.mxu0 0.0
    %1289 = vmatpush1.msra.mxu0 0.0
    %1290 = vmatprep.subr.mxu0 0.0
    %1291 = vmatpush1.msra.mxu0 0.0
    %1292 = vmatprep.subr.mxu0 0.0
    %1293 = vmatpush1.msra.mxu0 0.0
    %1294 = vmatprep.subr.mxu0 0.0
    %1295 = vmatpush1.msra.mxu0 0.0
    %1296 = vmatprep.subr.mxu0 0.0
    %1297 = vmatpush1.msra.mxu0 0.0
    %1298 = vmatprep.subr.mxu0 0.0
    %1299 = vmatpush1.msra.mxu0 0.0
    %1300 = vmatprep.subr.mxu0 0.0
    %1301 = vmatpush1.msra.mxu0 0.0
    %1302 = vmatprep.subr.mxu0 0.0
    %1303 = vmatpush1.msra.mxu0 0.0
    %1304 = vmatprep.subr.mxu0 0.0
    %1305 = vmatpush1.msra.mxu0 0.0
    %1306 = vmatprep.subr.mxu0 0.0
    %1307 = vmatpush1.msra.mxu0 0.0
    %1308 = vmatprep.subr.mxu0 0.0
    %1309 = vmatpush1.msra.mxu0 0.0
    %1310 = vmatprep.subr.mxu0 0.0
    %1311 = vmatpush1.msra.mxu0 %v45
    %1312 = vmatprep.subr.mxu0 0.0
    %1313 = vmatpush1.msra.mxu0 %v44
    %1314 = vmatprep.subr.mxu0 0.0
    %1315 = vmatpush1.msra.mxu0 %v43
    %1316 = vmatprep.subr.mxu0 0.0
    %1317 = vmatpush1.msra.mxu0 %v42
    %1318 = vmatprep.subr.mxu0 0.0
    %1319 = vmatpush2.msra.mxu0 0.0
    %1320 = vmatprep.subr.mxu0 0.0
    %1321 = vmatpush2.msra.mxu0 0.0
    %1322 = vmatprep.subr.mxu0 0.0
    %1323 = vmatpush2.msra.mxu0 0.0
    %1324 = vmatprep.subr.mxu0 0.0
    %1325 = vmatpush2.msra.mxu0 0.0
    %1326 = vmatprep.subr.mxu0 0.0
    %1327 = vmatpush2.msra.mxu0 0.0
    %1328 = vmatprep.subr.mxu0 0.0
    %1329 = vmatpush2.msra.mxu0 0.0
    %1330 = vmatprep.subr.mxu0 0.0
    %1331 = vmatpush2.msra.mxu0 0.0
    %1332 = vmatprep.subr.mxu0 0.0
    %1333 = vmatpush2.msra.mxu0 0.0
    %1334 = vmatprep.subr.mxu0 0.0
    %1335 = vmatpush2.msra.mxu0 0.0
    %1336 = vmatprep.subr.mxu0 0.0
    %1337 = vmatpush2.msra.mxu0 0.0
    %1338 = vmatprep.subr.mxu0 0.0
    %1339 = vmatpush2.msra.mxu0 0.0
    %1340 = vmatprep.subr.mxu0 0.0
    %1341 = vmatpush2.msra.mxu0 0.0
    %1342 = vmatprep.subr.mxu0 0.0
    %1343 = vmatpush2.msra.mxu0 0.0
    %1344 = vmatprep.subr.mxu0 0.0
    %1345 = vmatpush2.msra.mxu0 0.0
    %1346 = vmatprep.subr.mxu0 0.0
    %1347 = vmatpush2.msra.mxu0 0.0
    %1348 = vmatprep.subr.mxu0 0.0
    %1349 = vmatpush2.msra.mxu0 0.0
    %1350 = vmatprep.mubr.f32.mxu0 0.0
    %1351 = vmatmul.mubr.f32.gmra.mxu0 %v1284
    %v1352 = vpop.f32.mrf.mxu0
    %v1353 = vadd.f32 0.0, %v1352
    %v1354 = vpop.f32.mrf.mxu0
    %1355 = vdwg.mxu0
    %v1357 = vrot.slane %v1353, 5
    %v1359 = vadd.f32 %v139, %v1357
    %v1360 = vmul.f32 %v1359, %v147
    %v1361 = vtanh.pop %v1360
    %v1362 = vmul.f32 %v1361, %v147
    %v1363 = vadd.f32 %v1362, %v148
    %v1365 = vrot.slane %v1273, 7
    %v1367 = vmul.f32 %v1363, %v1365
    %1369 = vrot.lane.b32.xlu0 %v1363, 64
    %v1370 = vpop.permute.xlu0 %1369
    %v1372 = vmul.f32 %v1363, %v1370
    %1374 = vrot.lane.b32.xlu0 %v1372, 32
    %v1375 = vpop.permute.xlu0 %1374
    %v1377 = vadd.f32 %v1367, %v1375
    %v1378 = vtanh.pop %v1377
    %1380 = vrot.lane.b32.xlu0 %v1378, 64
    %v1381 = vpop.permute.xlu0 %1380
    %v1383 = vmul.f32 %v1363, %v1381
    %v1385 = vrot.slane %v1383, 3
    %1386 = vrot.lane.b32.xlu0 %v1385, 32
    %v1387 = vpop.permute.xlu0 %1386
    %v1388 = vsel %vm149, %v1387, 0
    %1390 = vmatprep.subr.mxu0 0.0
    %1391 = vmatpush1.msra.mxu0 0.0
    %1392 = vmatprep.subr.mxu0 0.0
    %1393 = vmatpush1.msra.mxu0 0.0
    %1394 = vmatprep.subr.mxu0 0.0
    %1395 = vmatpush1.msra.mxu0 0.0
    %1396 = vmatprep.subr.mxu0 0.0
    %1397 = vmatpush1.msra.mxu0 0.0
    %1398 = vmatprep.subr.mxu0 0.0
    %1399 = vmatpush1.msra.mxu0 0.0
    %1400 = vmatprep.subr.mxu0 0.0
    %1401 = vmatpush1.msra.mxu0 0.0
    %1402 = vmatprep.subr.mxu0 0.0
    %1403 = vmatpush1.msra.mxu0 0.0
    %1404 = vmatprep.subr.mxu0 0.0
    %1405 = vmatpush1.msra.mxu0 0.0
    %1406 = vmatprep.subr.mxu0 0.0
    %1407 = vmatpush1.msra.mxu0 0.0
    %1408 = vmatprep.subr.mxu0 0.0
    %1409 = vmatpush1.msra.mxu0 0.0
    %1410 = vmatprep.subr.mxu0 0.0
    %1411 = vmatpush1.msra.mxu0 0.0
    %1412 = vmatprep.subr.mxu0 0.0
    %1413 = vmatpush1.msra.mxu0 0.0
    %1414 = vmatprep.subr.mxu0 0.0
    %1415 = vmatpush1.msra.mxu0 %v45
    %1416 = vmatprep.subr.mxu0 0.0
    %1417 = vmatpush1.msra.mxu0 %v44
    %1418 = vmatprep.subr.mxu0 0.0
    %1419 = vmatpush1.msra.mxu0 %v43
    %1420 = vmatprep.subr.mxu0 0.0
    %1421 = vmatpush1.msra.mxu0 %v42
    %1422 = vmatprep.subr.mxu0 0.0
    %1423 = vmatpush2.msra.mxu0 0.0
    %1424 = vmatprep.subr.mxu0 0.0
    %1425 = vmatpush2.msra.mxu0 0.0
    %1426 = vmatprep.subr.mxu0 0.0
    %1427 = vmatpush2.msra.mxu0 0.0
    %1428 = vmatprep.subr.mxu0 0.0
    %1429 = vmatpush2.msra.mxu0 0.0
    %1430 = vmatprep.subr.mxu0 0.0
    %1431 = vmatpush2.msra.mxu0 0.0
    %1432 = vmatprep.subr.mxu0 0.0
    %1433 = vmatpush2.msra.mxu0 0.0
    %1434 = vmatprep.subr.mxu0 0.0
    %1435 = vmatpush2.msra.mxu0 0.0
    %1436 = vmatprep.subr.mxu0 0.0
    %1437 = vmatpush2.msra.mxu0 0.0
    %1438 = vmatprep.subr.mxu0 0.0
    %1439 = vmatpush2.msra.mxu0 0.0
    %1440 = vmatprep.subr.mxu0 0.0
    %1441 = vmatpush2.msra.mxu0 0.0
    %1442 = vmatprep.subr.mxu0 0.0
    %1443 = vmatpush2.msra.mxu0 0.0
    %1444 = vmatprep.subr.mxu0 0.0
    %1445 = vmatpush2.msra.mxu0 0.0
    %1446 = vmatprep.subr.mxu0 0.0
    %1447 = vmatpush2.msra.mxu0 0.0
    %1448 = vmatprep.subr.mxu0 0.0
    %1449 = vmatpush2.msra.mxu0 0.0
    %1450 = vmatprep.subr.mxu0 0.0
    %1451 = vmatpush2.msra.mxu0 0.0
    %1452 = vmatprep.subr.mxu0 0.0
    %1453 = vmatpush2.msra.mxu0 0.0
    %1454 = vmatprep.mubr.f32.mxu0 0.0
    %1455 = vmatmul.mubr.f32.gmra.mxu0 %v1388
    %v1456 = vpop.f32.mrf.mxu0
    %v1457 = vadd.f32 0.0, %v1456
    %v1458 = vpop.f32.mrf.mxu0
    %1459 = vdwg.mxu0
    %v1461 = vrot.slane %v1457, 4
    %v1463 = vadd.f32 %v139, %v1461
    %v1464 = vmul.f32 %v1463, %v147
    %v1465 = vtanh.pop %v1464
    %v1466 = vmul.f32 %v1465, %v147
    %v1467 = vadd.f32 %v1466, %v148
    %v1469 = vrot.slane %v1377, 7
    %v1471 = vmul.f32 %v1467, %v1469
    %1473 = vrot.lane.b32.xlu0 %v1467, 64
    %v1474 = vpop.permute.xlu0 %1473
    %v1476 = vmul.f32 %v1467, %v1474
    %1478 = vrot.lane.b32.xlu0 %v1476, 32
    %v1479 = vpop.permute.xlu0 %1478
    %v1481 = vadd.f32 %v1471, %v1479
    %v1482 = vtanh.pop %v1481
    %1484 = vrot.lane.b32.xlu0 %v1482, 64
    %v1485 = vpop.permute.xlu0 %1484
    %v1487 = vmul.f32 %v1467, %v1485
    %v1489 = vrot.slane %v1487, 4
    %1490 = vrot.lane.b32.xlu0 %v1489, 32
    %v1491 = vpop.permute.xlu0 %1490
    %v1492 = vsel %vm149, %v1491, 0
    %1494 = vmatprep.subr.mxu0 0.0
    %1495 = vmatpush1.msra.mxu0 0.0
    %1496 = vmatprep.subr.mxu0 0.0
    %1497 = vmatpush1.msra.mxu0 0.0
    %1498 = vmatprep.subr.mxu0 0.0
    %1499 = vmatpush1.msra.mxu0 0.0
    %1500 = vmatprep.subr.mxu0 0.0
    %1501 = vmatpush1.msra.mxu0 0.0
    %1502 = vmatprep.subr.mxu0 0.0
    %1503 = vmatpush1.msra.mxu0 0.0
    %1504 = vmatprep.subr.mxu0 0.0
    %1505 = vmatpush1.msra.mxu0 0.0
    %1506 = vmatprep.subr.mxu0 0.0
    %1507 = vmatpush1.msra.mxu0 0.0
    %1508 = vmatprep.subr.mxu0 0.0
    %1509 = vmatpush1.msra.mxu0 0.0
    %1510 = vmatprep.subr.mxu0 0.0
    %1511 = vmatpush1.msra.mxu0 0.0
    %1512 = vmatprep.subr.mxu0 0.0
    %1513 = vmatpush1.msra.mxu0 0.0
    %1514 = vmatprep.subr.mxu0 0.0
    %1515 = vmatpush1.msra.mxu0 0.0
    %1516 = vmatprep.subr.mxu0 0.0
    %1517 = vmatpush1.msra.mxu0 0.0
    %1518 = vmatprep.subr.mxu0 0.0
    %1519 = vmatpush1.msra.mxu0 %v45
    %1520 = vmatprep.subr.mxu0 0.0
    %1521 = vmatpush1.msra.mxu0 %v44
    %1522 = vmatprep.subr.mxu0 0.0
    %1523 = vmatpush1.msra.mxu0 %v43
    %1524 = vmatprep.subr.mxu0 0.0
    %1525 = vmatpush1.msra.mxu0 %v42
    %1526 = vmatprep.subr.mxu0 0.0
    %1527 = vmatpush2.msra.mxu0 0.0
    %1528 = vmatprep.subr.mxu0 0.0
    %1529 = vmatpush2.msra.mxu0 0.0
    %1530 = vmatprep.subr.mxu0 0.0
    %1531 = vmatpush2.msra.mxu0 0.0
    %1532 = vmatprep.subr.mxu0 0.0
    %1533 = vmatpush2.msra.mxu0 0.0
    %1534 = vmatprep.subr.mxu0 0.0
    %1535 = vmatpush2.msra.mxu0 0.0
    %1536 = vmatprep.subr.mxu0 0.0
    %1537 = vmatpush2.msra.mxu0 0.0
    %1538 = vmatprep.subr.mxu0 0.0
    %1539 = vmatpush2.msra.mxu0 0.0
    %1540 = vmatprep.subr.mxu0 0.0
    %1541 = vmatpush2.msra.mxu0 0.0
    %1542 = vmatprep.subr.mxu0 0.0
    %1543 = vmatpush2.msra.mxu0 0.0
    %1544 = vmatprep.subr.mxu0 0.0
    %1545 = vmatpush2.msra.mxu0 0.0
    %1546 = vmatprep.subr.mxu0 0.0
    %1547 = vmatpush2.msra.mxu0 0.0
    %1548 = vmatprep.subr.mxu0 0.0
    %1549 = vmatpush2.msra.mxu0 0.0
    %1550 = vmatprep.subr.mxu0 0.0
    %1551 = vmatpush2.msra.mxu0 0.0
    %1552 = vmatprep.subr.mxu0 0.0
    %1553 = vmatpush2.msra.mxu0 0.0
    %1554 = vmatprep.subr.mxu0 0.0
    %1555 = vmatpush2.msra.mxu0 0.0
    %1556 = vmatprep.subr.mxu0 0.0
    %1557 = vmatpush2.msra.mxu0 0.0
    %1558 = vmatprep.mubr.f32.mxu0 0.0
    %1559 = vmatmul.mubr.f32.gmra.mxu0 %v1492
    %v1560 = vpop.f32.mrf.mxu0
    %v1561 = vadd.f32 0.0, %v1560
    %v1562 = vpop.f32.mrf.mxu0
    %1563 = vdwg.mxu0
    %v1565 = vrot.slane %v1561, 3
    %v1567 = vadd.f32 %v139, %v1565
    %v1568 = vmul.f32 %v1567, %v147
    %v1569 = vtanh.pop %v1568
    %v1570 = vmul.f32 %v1569, %v147
    %v1571 = vadd.f32 %v1570, %v148
    %v1573 = vrot.slane %v1481, 7
    %v1575 = vmul.f32 %v1571, %v1573
    %1577 = vrot.lane.b32.xlu0 %v1571, 64
    %v1578 = vpop.permute.xlu0 %1577
    %v1580 = vmul.f32 %v1571, %v1578
    %1582 = vrot.lane.b32.xlu0 %v1580, 32
    %v1583 = vpop.permute.xlu0 %1582
    %v1585 = vadd.f32 %v1575, %v1583
    %v1586 = vtanh.pop %v1585
    %1588 = vrot.lane.b32.xlu0 %v1586, 64
    %v1589 = vpop.permute.xlu0 %1588
    %v1591 = vmul.f32 %v1571, %v1589
    %v1593 = vrot.slane %v1591, 5
    %1594 = vrot.lane.b32.xlu0 %v1593, 32
    %v1595 = vpop.permute.xlu0 %1594
    %v1596 = vsel %vm149, %v1595, 0
    %1598 = vmatprep.subr.mxu0 0.0
    %1599 = vmatpush1.msra.mxu0 0.0
    %1600 = vmatprep.subr.mxu0 0.0
    %1601 = vmatpush1.msra.mxu0 0.0
    %1602 = vmatprep.subr.mxu0 0.0
    %1603 = vmatpush1.msra.mxu0 0.0
    %1604 = vmatprep.subr.mxu0 0.0
    %1605 = vmatpush1.msra.mxu0 0.0
    %1606 = vmatprep.subr.mxu0 0.0
    %1607 = vmatpush1.msra.mxu0 0.0
    %1608 = vmatprep.subr.mxu0 0.0
    %1609 = vmatpush1.msra.mxu0 0.0
    %1610 = vmatprep.subr.mxu0 0.0
    %1611 = vmatpush1.msra.mxu0 0.0
    %1612 = vmatprep.subr.mxu0 0.0
    %1613 = vmatpush1.msra.mxu0 0.0
    %1614 = vmatprep.subr.mxu0 0.0
    %1615 = vmatpush1.msra.mxu0 0.0
    %1616 = vmatprep.subr.mxu0 0.0
    %1617 = vmatpush1.msra.mxu0 0.0
    %1618 = vmatprep.subr.mxu0 0.0
    %1619 = vmatpush1.msra.mxu0 0.0
    %1620 = vmatprep.subr.mxu0 0.0
    %1621 = vmatpush1.msra.mxu0 0.0
    %1622 = vmatprep.subr.mxu0 0.0
    %1623 = vmatpush1.msra.mxu0 %v45
    %1624 = vmatprep.subr.mxu0 0.0
    %1625 = vmatpush1.msra.mxu0 %v44
    %1626 = vmatprep.subr.mxu0 0.0
    %1627 = vmatpush1.msra.mxu0 %v43
    %1628 = vmatprep.subr.mxu0 0.0
    %1629 = vmatpush1.msra.mxu0 %v42
    %1630 = vmatprep.subr.mxu0 0.0
    %1631 = vmatpush2.msra.mxu0 0.0
    %1632 = vmatprep.subr.mxu0 0.0
    %1633 = vmatpush2.msra.mxu0 0.0
    %1634 = vmatprep.subr.mxu0 0.0
    %1635 = vmatpush2.msra.mxu0 0.0
    %1636 = vmatprep.subr.mxu0 0.0
    %1637 = vmatpush2.msra.mxu0 0.0
    %1638 = vmatprep.subr.mxu0 0.0
    %1639 = vmatpush2.msra.mxu0 0.0
    %1640 = vmatprep.subr.mxu0 0.0
    %1641 = vmatpush2.msra.mxu0 0.0
    %1642 = vmatprep.subr.mxu0 0.0
    %1643 = vmatpush2.msra.mxu0 0.0
    %1644 = vmatprep.subr.mxu0 0.0
    %1645 = vmatpush2.msra.mxu0 0.0
    %1646 = vmatprep.subr.mxu0 0.0
    %1647 = vmatpush2.msra.mxu0 0.0
    %1648 = vmatprep.subr.mxu0 0.0
    %1649 = vmatpush2.msra.mxu0 0.0
    %1650 = vmatprep.subr.mxu0 0.0
    %1651 = vmatpush2.msra.mxu0 0.0
    %1652 = vmatprep.subr.mxu0 0.0
    %1653 = vmatpush2.msra.mxu0 0.0
    %1654 = vmatprep.subr.mxu0 0.0
    %1655 = vmatpush2.msra.mxu0 0.0
    %1656 = vmatprep.subr.mxu0 0.0
    %1657 = vmatpush2.msra.mxu0 0.0
    %1658 = vmatprep.subr.mxu0 0.0
    %1659 = vmatpush2.msra.mxu0 0.0
    %1660 = vmatprep.subr.mxu0 0.0
    %1661 = vmatpush2.msra.mxu0 0.0
    %1662 = vmatprep.mubr.f32.mxu0 0.0
    %1663 = vmatmul.mubr.f32.gmra.mxu0 %v1596
    %v1664 = vpop.f32.mrf.mxu0
    %v1665 = vadd.f32 0.0, %v1664
    %v1666 = vpop.f32.mrf.mxu0
    %1667 = vdwg.mxu0
    %v1669 = vrot.slane %v1665, 2
    %v1671 = vadd.f32 %v139, %v1669
    %v1672 = vmul.f32 %v1671, %v147
    %v1673 = vtanh.pop %v1672
    %v1674 = vmul.f32 %v1673, %v147
    %v1675 = vadd.f32 %v1674, %v148
    %v1677 = vrot.slane %v1585, 7
    %v1679 = vmul.f32 %v1675, %v1677
    %1681 = vrot.lane.b32.xlu0 %v1675, 64
    %v1682 = vpop.permute.xlu0 %1681
    %v1684 = vmul.f32 %v1675, %v1682
    %1686 = vrot.lane.b32.xlu0 %v1684, 32
    %v1687 = vpop.permute.xlu0 %1686
    %v1689 = vadd.f32 %v1679, %v1687
    %v1690 = vtanh.pop %v1689
    %1692 = vrot.lane.b32.xlu0 %v1690, 64
    %v1693 = vpop.permute.xlu0 %1692
    %v1695 = vmul.f32 %v1675, %v1693
    %v1697 = vrot.slane %v1695, 6
    %1698 = vrot.lane.b32.xlu0 %v1697, 32
    %v1699 = vpop.permute.xlu0 %1698
    %v1700 = vsel %vm149, %v1699, 0
    %1702 = vmatprep.subr.mxu0 0.0
    %1703 = vmatpush1.msra.mxu0 0.0
    %1704 = vmatprep.subr.mxu0 0.0
    %1705 = vmatpush1.msra.mxu0 0.0
    %1706 = vmatprep.subr.mxu0 0.0
    %1707 = vmatpush1.msra.mxu0 0.0
    %1708 = vmatprep.subr.mxu0 0.0
    %1709 = vmatpush1.msra.mxu0 0.0
    %1710 = vmatprep.subr.mxu0 0.0
    %1711 = vmatpush1.msra.mxu0 0.0
    %1712 = vmatprep.subr.mxu0 0.0
    %1713 = vmatpush1.msra.mxu0 0.0
    %1714 = vmatprep.subr.mxu0 0.0
    %1715 = vmatpush1.msra.mxu0 0.0
    %1716 = vmatprep.subr.mxu0 0.0
    %1717 = vmatpush1.msra.mxu0 0.0
    %1718 = vmatprep.subr.mxu0 0.0
    %1719 = vmatpush1.msra.mxu0 0.0
    %1720 = vmatprep.subr.mxu0 0.0
    %1721 = vmatpush1.msra.mxu0 0.0
    %1722 = vmatprep.subr.mxu0 0.0
    %1723 = vmatpush1.msra.mxu0 0.0
    %1724 = vmatprep.subr.mxu0 0.0
    %1725 = vmatpush1.msra.mxu0 0.0
    %1726 = vmatprep.subr.mxu0 0.0
    %1727 = vmatpush1.msra.mxu0 %v45
    %1728 = vmatprep.subr.mxu0 0.0
    %1729 = vmatpush1.msra.mxu0 %v44
    %1730 = vmatprep.subr.mxu0 0.0
    %1731 = vmatpush1.msra.mxu0 %v43
    %1732 = vmatprep.subr.mxu0 0.0
    %1733 = vmatpush1.msra.mxu0 %v42
    %1734 = vmatprep.subr.mxu0 0.0
    %1735 = vmatpush2.msra.mxu0 0.0
    %1736 = vmatprep.subr.mxu0 0.0
    %1737 = vmatpush2.msra.mxu0 0.0
    %1738 = vmatprep.subr.mxu0 0.0
    %1739 = vmatpush2.msra.mxu0 0.0
    %1740 = vmatprep.subr.mxu0 0.0
    %1741 = vmatpush2.msra.mxu0 0.0
    %1742 = vmatprep.subr.mxu0 0.0
    %1743 = vmatpush2.msra.mxu0 0.0
    %1744 = vmatprep.subr.mxu0 0.0
    %1745 = vmatpush2.msra.mxu0 0.0
    %1746 = vmatprep.subr.mxu0 0.0
    %1747 = vmatpush2.msra.mxu0 0.0
    %1748 = vmatprep.subr.mxu0 0.0
    %1749 = vmatpush2.msra.mxu0 0.0
    %1750 = vmatprep.subr.mxu0 0.0
    %1751 = vmatpush2.msra.mxu0 0.0
    %1752 = vmatprep.subr.mxu0 0.0
    %1753 = vmatpush2.msra.mxu0 0.0
    %1754 = vmatprep.subr.mxu0 0.0
    %1755 = vmatpush2.msra.mxu0 0.0
    %1756 = vmatprep.subr.mxu0 0.0
    %1757 = vmatpush2.msra.mxu0 0.0
    %1758 = vmatprep.subr.mxu0 0.0
    %1759 = vmatpush2.msra.mxu0 0.0
    %1760 = vmatprep.subr.mxu0 0.0
    %1761 = vmatpush2.msra.mxu0 0.0
    %1762 = vmatprep.subr.mxu0 0.0
    %1763 = vmatpush2.msra.mxu0 0.0
    %1764 = vmatprep.subr.mxu0 0.0
    %1765 = vmatpush2.msra.mxu0 0.0
    %1766 = vmatprep.mubr.f32.mxu0 0.0
    %1767 = vmatmul.mubr.f32.gmra.mxu0 %v1700
    %v1768 = vpop.f32.mrf.mxu0
    %v1769 = vadd.f32 0.0, %v1768
    %v1770 = vpop.f32.mrf.mxu0
    %1771 = vdwg.mxu0
    %v1773 = vrot.slane %v1769, 1
    %v1775 = vadd.f32 %v139, %v1773
    %v1776 = vmul.f32 %v1775, %v147
    %v1777 = vtanh.pop %v1776
    %v1778 = vmul.f32 %v1777, %v147
    %v1779 = vadd.f32 %v1778, %v148
    %v1781 = vrot.slane %v1689, 7
    %v1783 = vmul.f32 %v1779, %v1781
    %1785 = vrot.lane.b32.xlu0 %v1779, 64
    %v1786 = vpop.permute.xlu0 %1785
    %v1788 = vmul.f32 %v1779, %v1786
    %1790 = vrot.lane.b32.xlu0 %v1788, 32
    %v1791 = vpop.permute.xlu0 %1790
    %v1793 = vadd.f32 %v1783, %v1791
    %v1794 = vtanh.pop %v1793
    %1796 = vrot.lane.b32.xlu0 %v1794, 64
    %v1797 = vpop.permute.xlu0 %1796
    %v1799 = vmul.f32 %v1779, %v1797
    %v1801 = vrot.slane %v1799, 7
    %1802 = vrot.lane.b32.xlu0 %v1801, 32
    %v1803 = vpop.permute.xlu0 %1802
    %v1804 = vsel %vm149, %v1803, 0
    %1806 = vmatprep.subr.mxu0 0.0
    %1807 = vmatpush1.msra.mxu0 0.0
    %1808 = vmatprep.subr.mxu0 0.0
    %1809 = vmatpush1.msra.mxu0 0.0
    %1810 = vmatprep.subr.mxu0 0.0
    %1811 = vmatpush1.msra.mxu0 0.0
    %1812 = vmatprep.subr.mxu0 0.0
    %1813 = vmatpush1.msra.mxu0 0.0
    %1814 = vmatprep.subr.mxu0 0.0
    %1815 = vmatpush1.msra.mxu0 0.0
    %1816 = vmatprep.subr.mxu0 0.0
    %1817 = vmatpush1.msra.mxu0 0.0
    %1818 = vmatprep.subr.mxu0 0.0
    %1819 = vmatpush1.msra.mxu0 0.0
    %1820 = vmatprep.subr.mxu0 0.0
    %1821 = vmatpush1.msra.mxu0 0.0
    %1822 = vmatprep.subr.mxu0 0.0
    %1823 = vmatpush1.msra.mxu0 0.0
    %1824 = vmatprep.subr.mxu0 0.0
    %1825 = vmatpush1.msra.mxu0 0.0
    %1826 = vmatprep.subr.mxu0 0.0
    %1827 = vmatpush1.msra.mxu0 0.0
    %1828 = vmatprep.subr.mxu0 0.0
    %1829 = vmatpush1.msra.mxu0 0.0
    %1830 = vmatprep.subr.mxu0 0.0
    %1831 = vmatpush1.msra.mxu0 %v50
    %1832 = vmatprep.subr.mxu0 0.0
    %1833 = vmatpush1.msra.mxu0 %v49
    %1834 = vmatprep.subr.mxu0 0.0
    %1835 = vmatpush1.msra.mxu0 %v48
    %1836 = vmatprep.subr.mxu0 0.0
    %1837 = vmatpush1.msra.mxu0 %v47
    %1838 = vmatprep.subr.mxu0 0.0
    %1839 = vmatpush2.msra.mxu0 0.0
    %1840 = vmatprep.subr.mxu0 0.0
    %1841 = vmatpush2.msra.mxu0 0.0
    %1842 = vmatprep.subr.mxu0 0.0
    %1843 = vmatpush2.msra.mxu0 0.0
    %1844 = vmatprep.subr.mxu0 0.0
    %1845 = vmatpush2.msra.mxu0 0.0
    %1846 = vmatprep.subr.mxu0 0.0
    %1847 = vmatpush2.msra.mxu0 0.0
    %1848 = vmatprep.subr.mxu0 0.0
    %1849 = vmatpush2.msra.mxu0 0.0
    %1850 = vmatprep.subr.mxu0 0.0
    %1851 = vmatpush2.msra.mxu0 0.0
    %1852 = vmatprep.subr.mxu0 0.0
    %1853 = vmatpush2.msra.mxu0 0.0
    %1854 = vmatprep.subr.mxu0 0.0
    %1855 = vmatpush2.msra.mxu0 0.0
    %1856 = vmatprep.subr.mxu0 0.0
    %1857 = vmatpush2.msra.mxu0 0.0
    %1858 = vmatprep.subr.mxu0 0.0
    %1859 = vmatpush2.msra.mxu0 0.0
    %1860 = vmatprep.subr.mxu0 0.0
    %1861 = vmatpush2.msra.mxu0 0.0
    %1862 = vmatprep.subr.mxu0 0.0
    %1863 = vmatpush2.msra.mxu0 0.0
    %1864 = vmatprep.subr.mxu0 0.0
    %1865 = vmatpush2.msra.mxu0 0.0
    %1866 = vmatprep.subr.mxu0 0.0
    %1867 = vmatpush2.msra.mxu0 0.0
    %1868 = vmatprep.subr.mxu0 0.0
    %1869 = vmatpush2.msra.mxu0 0.0
    %1870 = vmatprep.mubr.f32.mxu0 0.0
    %1871 = vmatmul.mubr.f32.gmra.mxu0 %v1804
    %v1872 = vpop.f32.mrf.mxu0
    %v1873 = vadd.f32 %v51, %v1872
    %v1874 = vpop.f32.mrf.mxu0
    %1875 = vdwg.mxu0
    %v1876 = vxor.u32 %v1873, 2147483648
    %v1877 = vmul.f32 %v1876, 1.442695
    %v1878 = vpow.pop %v1877
    %v1879 = vadd.f32 %v1878, 1.0
    %v1880 = vrcp.pop %v1879
    %v1881 = vmul.f32 1.0, %v1880
    %vm1882 = vcmask 1040384
    %v1883 = vsel %vm1882, %v53, -inf
    %1884 = vmax.xlane.f32.xlu0 %v1883
    %v1885 = vpop.xlane.xlu0 %1884
    %v1886 = vmul.f32 %v1881, %v52
    %v1887 = vsel %vm1882, %v1886, 0.0
    %1888 = vadd.xlane.f32.xlu0 %v1887
    %v1889 = vpop.xlane.xlu0 %1888
    %v1890 = vadd.f32 %v1889, %v1885
    %v1891 = vxor.u32 %v1890, 2147483648
    %v1892 = vmul.f32 %v1891, 1.442695
    %v1893 = vpow.pop %v1892
    %v1894 = vadd.f32 %v1893, 1.0
    %v1895 = vrcp.pop %v1894
    %v1896 = vmul.f32 1.0, %v1895
    %vm1897 = vcmask 0
    %1898 = vst.msk [vmem:[#allocation7] sm:$0x1] %vm1897, %v1896
    // Predicated region
    $region18: #{tpu_custom_call.1} parent=1 // pred_check
      _
    $region19: #{tpu_custom_call.1} parent=1 // pred_check_branch
      %1900 = sbr.rel (0) target = $region21
    $region20: #{tpu_custom_call.1} parent=1 // pred_region
      %s1902 = ssub.s32 16, 16
      %1903 = vsyncadd [#allocation4], %s1902
      %s1905 = sshll.u32 [#allocation7], 4
      %s1906 = int_to_ptr.vmem [resolvable:$true] %s1905
      %1908 = dma.vmem_to_hbm [thread:$0]  %s1906, 16, %s2, [#allocation4]
    $region21: #{tpu_custom_call.1} parent=1 // pred_fallthru
      _
    // Predicated region
    $region22: #{tpu_custom_call.1} parent=1 // pred_check
      _
    $region23: #{tpu_custom_call.1} parent=1 // pred_check_branch
      %1910 = sbr.rel (0) target = $region25
    $region24: #{tpu_custom_call.1} parent=1 // pred_region
      %1911 = dma.done [#allocation4], 16
    $region25: #{tpu_custom_call.1} parent=1 // pred_fallthru
      _
    %1912 = vsyncpa [#allocation3], 1
    %1913 = vsyncpa [#allocation6], 1
    %1914 = vsyncpa [#allocation4], 1

</llo_original>
